<compile_context>
chip_gen: v5e
topology: v5e:2x2
jax: 0.10.0
libtpu: 0.0.40
codegen_flags: <defaults>
</compile_context>

<pallas_src>
import functools

import jax
import jax.numpy as jnp
from jax.experimental import pallas as pl
from jax.experimental.pallas import tpu as pltpu


# ---------------------------------------------------------------------------
# In-kernel helpers
# ---------------------------------------------------------------------------

def _layernorm_rows(z, gamma, beta, eps, approx_recip):
    """Row-wise LayerNorm matching the reference module.

    (z - mean) / (std_unbiased + eps) * gamma + beta, computed with a single
    pass over the lane dimension (sum and sum-of-squares -> fewer XLU
    reductions and fewer f32 temporaries than mean + centered sum-of-squares).
    """
    d = z.shape[-1]
    sum_z = jnp.sum(z, axis=-1, keepdims=True)
    sum_zz = jnp.sum(z * z, axis=-1, keepdims=True)
    mean = sum_z * (1.0 / d)
    # sum((z-mean)^2) == sum(z^2) - mean*sum(z); guard tiny negatives from
    # cancellation before the sqrt.
    var = jnp.maximum(sum_zz - mean * sum_z, 0.0) / (d - 1)
    denom = jnp.sqrt(var) + eps
    if approx_recip:
        inv = pl.reciprocal(denom, approx=True)     # EUP slot, ~free
    else:
        inv = 1.0 / denom
    return gamma * ((z - mean) * inv) + beta


def ffn_resident_kernel(x_ref, w1_ref, b1_ref, w2_ref, b2_ref,
                        gamma_ref, beta_ref, o_ref, *,
                        eps, compute_dtype, approx_recip):
    """Weights VMEM-resident: the whole FFN for one row tile per grid step."""
    x = x_ref[...]                                   # (tm, d_model)
    xc = x.astype(compute_dtype)

    # fc1 + ReLU (MXU matmul, f32 accumulation; bias/ReLU in f32).
    h = jnp.dot(xc, w1_ref[...], preferred_element_type=jnp.float32)
    h = jnp.maximum(h + b1_ref[...], 0.0)

    # fc2
    y = jnp.dot(h.astype(compute_dtype), w2_ref[...],
                preferred_element_type=jnp.float32)

    # bias + dropout(identity) + residual, all in f32, then LayerNorm.
    z = y + b2_ref[...] + x.astype(jnp.float32)
    out = _layernorm_rows(z, gamma_ref[...], beta_ref[...], eps, approx_recip)
    o_ref[...] = out.astype(o_ref.dtype)


def ffn_stream_kernel(x_ref, w1_ref, b1_ref, w2_ref, b2_ref,
                      gamma_ref, beta_ref, o_ref, acc_ref, *,
                      eps, compute_dtype, approx_recip):
    """d_ff streamed in slabs; f32 accumulator; last slab fused in finalize."""
    kf = pl.program_id(1)
    last = pl.num_programs(1) - 1

    x = x_ref[...]
    xc = x.astype(compute_dtype)

    # relu(x @ W1[:, kf] + b1[kf]) @ W2[kf, :] sums exactly to the full fc2.
    h = jnp.dot(xc, w1_ref[...], preferred_element_type=jnp.float32)
    h = jnp.maximum(h + b1_ref[...], 0.0)
    partial = jnp.dot(h.astype(compute_dtype), w2_ref[...],
                      preferred_element_type=jnp.float32)

    @pl.when(kf == 0)
    def _():
        acc_ref[...] = jnp.zeros_like(acc_ref)

    @pl.when(kf != last)
    def _():
        acc_ref[...] += partial

    @pl.when(kf == last)
    def _():
        # Fuse the final slab: no accumulator read-modify-write on this step.
        z = acc_ref[...] + partial + b2_ref[...] + x.astype(jnp.float32)
        out = _layernorm_rows(z, gamma_ref[...], beta_ref[...], eps,
                              approx_recip)
        o_ref[...] = out.astype(o_ref.dtype)


# ---------------------------------------------------------------------------
# Wrapper
# ---------------------------------------------------------------------------

def _round_up(v, m):
    return ((v + m - 1) // m) * m


def _pick_tf(d_ff, target):
    """Largest multiple-of-128 divisor of d_ff that is <= target (else d_ff)."""
    if d_ff <= target or d_ff % 128 != 0:
        return d_ff
    for cand in range(target - target % 128, 127, -128):
        if d_ff % cand == 0:
            return cand
    return d_ff


def _vmem_capacity_bytes():
    """Physical VMEM of the current generation; conservative 64 MiB fallback."""
    try:
        cap = getattr(pltpu.get_tpu_info(), "vmem_capacity_bytes", None)
        if cap:
            return int(cap)
    except Exception:
        pass
    return 64 * 1024 * 1024


def position_wise_feed_forward(x, w1, b1, w2, b2, gamma, beta, *,
                               eps=1e-6, tm=None, tf=None,
                               compute_dtype=jnp.bfloat16,
                               approx_recip=None,
                               weights_resident=None):
    """x: (batch, seq, d_model). Weights stored (in, out) so the kernel does x@W+b.

    compute_dtype: dtype of the matmul operands (bfloat16 default: 2x MXU rate
      on v6e/v7x and half the weight DMA bytes). Accumulation, residual add
      and LayerNorm are always f32. Use jnp.float32 for the exact path.
    approx_recip: None -> EUP approximate reciprocal only when compute_dtype
      is not f32 (never on the exact path).
    weights_resident: None -> auto (resident whenever W1+W2 fit the VMEM
      budget); True/False forces the path.
    """
    batch, seq, d_model = x.shape
    d_ff = w1.shape[1]
    n = batch * seq

    compute_dtype = jnp.dtype(compute_dtype)
    if approx_recip is None:
        approx_recip = compute_dtype != jnp.dtype(jnp.float32)

    act_bytes = jnp.dtype(x.dtype).itemsize
    out_bytes = act_bytes
    w_bytes = compute_dtype.itemsize

    capacity = _vmem_capacity_bytes()
    budget = int(capacity * 0.80)        # v5e/v6e ~102 MiB, v7x ~51 MiB
    head = 2 << 20                       # Mosaic internal scratch headroom

    n_rows = _round_up(max(n, 8), 8)

    def est_resident(tm_):
        return (2 * tm_ * d_model * act_bytes            # x tiles (2 bufs)
                + 2 * tm_ * d_model * out_bytes           # out tiles
                + 2 * 2 * d_model * d_ff * w_bytes        # W1 + W2 (2 bufs)
                + tm_ * d_ff * (4 + w_bytes)              # h f32 + cast copy
                + 4 * tm_ * d_model * 4                   # z / LN temporaries
                + 2 * (d_ff + 3 * d_model) * 4            # b1/b2/gamma/beta
                + head)

    def est_stream(tm_, tf_):
        return (2 * tm_ * d_model * act_bytes
                + 2 * tm_ * d_model * out_bytes
                + 2 * d_model * tf_ * w_bytes             # W1 slab (2 bufs)
                + 2 * tf_ * d_model * w_bytes             # W2 slab (2 bufs)
                + tm_ * d_model * 4                       # f32 accumulator
                + tm_ * tf_ * (4 + w_bytes)               # h f32 + cast copy
                + 4 * tm_ * d_model * 4                   # z / LN temporaries
                + 2 * (tf_ + 3 * d_model) * 4
                + head)

    if tm is None:
        tm_cands = sorted({min(c, n_rows) for c in
                           (1024, 512, 256, 128, 64, 32, 16, 8)}, reverse=True)
    else:
        tm_cands = [max(8, min(_round_up(tm, 8), n_rows))]

    if weights_resident is None:
        use_resident = any(est_resident(t) <= budget for t in tm_cands)
    else:
        use_resident = bool(weights_resident)

    if use_resident:
        tm_sel = next((t for t in tm_cands if est_resident(t) <= budget),
                      tm_cands[-1])
        tf_sel = d_ff
        est = est_resident(tm_sel)
    else:
        # Keep tf >= 512 by default so the strided W1 column-slab DMA stays
        # reasonably contiguous.
        tf_sel = _pick_tf(d_ff, tf if tf is not None else 512)
        tm_sel = next((t for t in tm_cands if est_stream(t, tf_sel) <= budget),
                      None)
        if tm_sel is None:
            tf_sel = _pick_tf(d_ff, 128)
            tm_sel = next((t for t in tm_cands
                           if est_stream(t, tf_sel) <= budget), tm_cands[-1])
        est = est_stream(tm_sel, tf_sel)

    vmem_limit = int(min(max(est + (4 << 20), 32 << 20), int(capacity * 0.9)))

    # Matmul operands shipped in the compute dtype (halves weight HBM traffic
    # for bf16); small per-channel vectors go in as f32 rows.
    w1c = w1.astype(compute_dtype)
    w2c = w2.astype(compute_dtype)
    b1_2d = b1.reshape(1, d_ff).astype(jnp.float32)
    b2_2d = b2.reshape(1, d_model).astype(jnp.float32)
    gamma_2d = gamma.reshape(1, d_model).astype(jnp.float32)
    beta_2d = beta.reshape(1, d_model).astype(jnp.float32)

    # Flatten tokens; no wrapper-side padding (the ragged last row tile is
    # handled by Pallas: OOB reads only feed padded rows, OOB writes masked).
    x2d = x.reshape(n, d_model)
    rows = pl.cdiv(n, tm_sel)

    if use_resident:
        grid = (rows,)
        in_specs = [
            pl.BlockSpec((tm_sel, d_model), lambda i: (i, 0)),   # x rows
            pl.BlockSpec((d_model, d_ff), lambda i: (0, 0)),     # W1 (resident)
            pl.BlockSpec((1, d_ff), lambda i: (0, 0)),           # b1
            pl.BlockSpec((d_ff, d_model), lambda i: (0, 0)),     # W2 (resident)
            pl.BlockSpec((1, d_model), lambda i: (0, 0)),        # b2
            pl.BlockSpec((1, d_model), lambda i: (0, 0)),        # gamma
            pl.BlockSpec((1, d_model), lambda i: (0, 0)),        # beta
        ]
        out_specs = pl.BlockSpec((tm_sel, d_model), lambda i: (i, 0))
        scratch_shapes = []
        kernel = functools.partial(ffn_resident_kernel, eps=eps,
                                   compute_dtype=compute_dtype,
                                   approx_recip=approx_recip)
        dims = ("parallel",)
    else:
        grid = (rows, d_ff // tf_sel)
        in_specs = [
            pl.BlockSpec((tm_sel, d_model), lambda i, kf: (i, 0)),   # x rows
            pl.BlockSpec((d_model, tf_sel), lambda i, kf: (0, kf)),  # W1 slab
            pl.BlockSpec((1, tf_sel), lambda i, kf: (0, kf)),        # b1 slab
            pl.BlockSpec((tf_sel, d_model), lambda i, kf: (kf, 0)),  # W2 slab
            pl.BlockSpec((1, d_model), lambda i, kf: (0, 0)),        # b2
            pl.BlockSpec((1, d_model), lambda i, kf: (0, 0)),        # gamma
            pl.BlockSpec((1, d_model), lambda i, kf: (0, 0)),        # beta
        ]
        out_specs = pl.BlockSpec((tm_sel, d_model), lambda i, kf: (i, 0))
        scratch_shapes = [pltpu.VMEM((tm_sel, d_model), jnp.float32)]
        kernel = functools.partial(ffn_stream_kernel, eps=eps,
                                   compute_dtype=compute_dtype,
                                   approx_recip=approx_recip)
        dims = ("parallel", "arbitrary")

    out2d = pl.pallas_call(
        kernel,
        out_shape=jax.ShapeDtypeStruct((n, d_model), x.dtype),
        grid_spec=pltpu.PrefetchScalarGridSpec(
            num_scalar_prefetch=0,
            grid=grid,
            in_specs=in_specs,
            out_specs=out_specs,
            scratch_shapes=scratch_shapes,
        ),
        compiler_params=pltpu.CompilerParams(
            dimension_semantics=dims,
            vmem_limit_bytes=vmem_limit),
    )(x2d, w1c, b1_2d, w2c, b2_2d, gamma_2d, beta_2d)

    return out2d.reshape(batch, seq, d_model)


# ---------------------------------------------------------------------------
# Params / reference / self-test
# ---------------------------------------------------------------------------

def init_params(key, d_model, d_ff, dtype=jnp.float32):
    """Deterministic param init matching the PyTorch module's __init__."""
    k1, k2 = jax.random.split(key)
    # xavier_normal_ for nn.Linear(in, out): std = sqrt(2 / (fan_in + fan_out))
    std1 = (2.0 / (d_model + d_ff)) ** 0.5
    std2 = (2.0 / (d_ff + d_model)) ** 0.5
    w1 = (jax.random.normal(k1, (d_model, d_ff), dtype) * std1).astype(dtype)
    b1 = jnp.zeros((d_ff,), dtype)
    w2 = (jax.random.normal(k2, (d_ff, d_model), dtype) * std2).astype(dtype)
    b2 = jnp.zeros((d_model,), dtype)
    gamma = jnp.ones((d_model,), dtype)
    beta = jnp.zeros((d_model,), dtype)
    return w1, b1, w2, b2, gamma, beta


def _reference(x, w1, b1, w2, b2, gamma, beta, eps=1e-6):
    """Pure-JAX reference of the PyTorch forward (eval-mode dropout)."""
    h = jnp.maximum(x @ w1 + b1, 0.0)
    y = h @ w2 + b2
    z = y + x
    mean = jnp.mean(z, axis=-1, keepdims=True)
    centered = z - mean
    var = jnp.sum(centered**2, axis=-1, keepdims=True) / (z.shape[-1] - 1)
    std = jnp.sqrt(var)
    return gamma * (centered / (std + eps)) + beta


if __name__ == "__main__":
    # Small, lane-dense shapes: d_model multiple of 128 (unmasked stores);
    # n = 144 tokens is deliberately NOT a multiple of the 64-row tile so the
    # ragged-edge (masked-write) path is exercised; d_ff=512 with tf=256
    # exercises the streamed d_ff reduction (2 slabs).
    batch, seq, d_model, d_ff = 2, 72, 128, 512

    key = jax.random.PRNGKey(0)
    kx, kp = jax.random.split(key)
    x = jax.random.normal(kx, (batch, seq, d_model), jnp.float32)
    params = init_params(kp, d_model, d_ff)

    ref = _reference(x, *params)

    # 1) Exact f32, weight-resident path (auto), ragged row tiles.
    out_res = position_wise_feed_forward(
        x, *params, compute_dtype=jnp.float32, tm=64)
    out_res = jax.block_until_ready(out_res)
    assert out_res.shape == x.shape and out_res.dtype == x.dtype
    assert jnp.allclose(out_res, ref, atol=1e-4, rtol=1e-4), \
        "resident f32 path mismatch vs reference"

    # 2) Exact f32, forced streaming (d_ff-reduction) path, ragged row tiles.
    out_str = position_wise_feed_forward(
        x, *params, compute_dtype=jnp.float32, tm=64, tf=256,
        weights_resident=False)
    out_str = jax.block_until_ready(out_str)
    assert out_str.shape == x.shape and out_str.dtype == x.dtype
    assert jnp.allclose(out_str, ref, atol=1e-4, rtol=1e-4), \
        "streaming f32 path mismatch vs reference"

    # 3) Default fast path: bf16 matmul operands, resident weights, EUP recip.
    out_fast = position_wise_feed_forward(x, *params)
    out_fast = jax.block_until_ready(out_fast)
    assert out_fast.shape == x.shape and out_fast.dtype == x.dtype
    assert jnp.allclose(out_fast, ref, atol=6e-2, rtol=6e-2), \
        "bf16 fast path mismatch vs reference"

    print("KERNEL_OK")
</pallas_src>

<mosaic_0001>
module attributes {stable_mosaic.version = 11 : i64} {
  func.func @ffn_resident_kernel(%arg0: i32, %arg1: memref<64x128xf32, #tpu.memory_space<vmem>>, %arg2: memref<128x512xf32, #tpu.memory_space<vmem>>, %arg3: memref<1x512xf32, #tpu.memory_space<vmem>>, %arg4: memref<512x128xf32, #tpu.memory_space<vmem>>, %arg5: memref<1x128xf32, #tpu.memory_space<vmem>>, %arg6: memref<1x128xf32, #tpu.memory_space<vmem>>, %arg7: memref<1x128xf32, #tpu.memory_space<vmem>>, %arg8: memref<64x128xf32, #tpu.memory_space<vmem>>) attributes {dimension_semantics = [#tpu.dimension_semantics<parallel>], iteration_bounds = array<i64: 3>, scalar_prefetch = 0 : i64, scratch_operands = 0 : i64, tpu.core_type = #tpu.core_type<tc>, window_params = [{transform_indices = @transform_0, window_bounds = array<i64: 64, 128>}, {pipeline_mode = #tpu.pipeline_mode<synchronous>, transform_indices = @transform_1, window_bounds = array<i64: 128, 512>}, {pipeline_mode = #tpu.pipeline_mode<synchronous>, transform_indices = @transform_2, window_bounds = array<i64: 1, 512>}, {pipeline_mode = #tpu.pipeline_mode<synchronous>, transform_indices = @transform_3, window_bounds = array<i64: 512, 128>}, {pipeline_mode = #tpu.pipeline_mode<synchronous>, transform_indices = @transform_4, window_bounds = array<i64: 1, 128>}, {pipeline_mode = #tpu.pipeline_mode<synchronous>, transform_indices = @transform_5, window_bounds = array<i64: 1, 128>}, {pipeline_mode = #tpu.pipeline_mode<synchronous>, transform_indices = @transform_6, window_bounds = array<i64: 1, 128>}, {transform_indices = @transform_7, window_bounds = array<i64: 64, 128>}]} {
    %c0 = arith.constant 0 : index
    %c0_0 = arith.constant 0 : index
    %0 = vector.load %arg1[%c0, %c0_0] : memref<64x128xf32, #tpu.memory_space<vmem>>, vector<64x128xf32>
    %c0_1 = arith.constant 0 : index
    %c0_2 = arith.constant 0 : index
    %1 = vector.load %arg2[%c0_1, %c0_2] : memref<128x512xf32, #tpu.memory_space<vmem>>, vector<128x512xf32>
    %cst = arith.constant dense<0.000000e+00> : vector<64x512xf32>
    %2 = tpu.matmul %0, %1, %cst {dimension_numbers = #tpu.dot_dimension_numbers<[1], [0], [0], [1], [0, 0, 1, 1], [], []>} : vector<64x128xf32>, vector<128x512xf32>, vector<64x512xf32> -> vector<64x512xf32>
    %c0_3 = arith.constant 0 : index
    %c0_4 = arith.constant 0 : index
    %3 = vector.load %arg3[%c0_3, %c0_4] : memref<1x512xf32, #tpu.memory_space<vmem>>, vector<1x512xf32>
    %4 = vector.broadcast %3 : vector<1x512xf32> to vector<64x512xf32>
    %5 = arith.addf %2, %4 : vector<64x512xf32>
    %cst_5 = arith.constant 0.000000e+00 : f32
    %6 = vector.broadcast %cst_5 : f32 to vector<64x512xf32>
    %7 = arith.maximumf %5, %6 : vector<64x512xf32>
    %c0_6 = arith.constant 0 : index
    %c0_7 = arith.constant 0 : index
    %8 = vector.load %arg4[%c0_6, %c0_7] : memref<512x128xf32, #tpu.memory_space<vmem>>, vector<512x128xf32>
    %cst_8 = arith.constant dense<0.000000e+00> : vector<64x128xf32>
    %9 = tpu.matmul %7, %8, %cst_8 {dimension_numbers = #tpu.dot_dimension_numbers<[1], [0], [0], [1], [0, 0, 1, 1], [], []>} : vector<64x512xf32>, vector<512x128xf32>, vector<64x128xf32> -> vector<64x128xf32>
    %c0_9 = arith.constant 0 : index
    %c0_10 = arith.constant 0 : index
    %10 = vector.load %arg5[%c0_9, %c0_10] : memref<1x128xf32, #tpu.memory_space<vmem>>, vector<1x128xf32>
    %11 = vector.broadcast %10 : vector<1x128xf32> to vector<64x128xf32>
    %12 = arith.addf %9, %11 : vector<64x128xf32>
    %13 = arith.addf %12, %0 : vector<64x128xf32>
    %c0_11 = arith.constant 0 : index
    %c0_12 = arith.constant 0 : index
    %14 = vector.load %arg6[%c0_11, %c0_12] : memref<1x128xf32, #tpu.memory_space<vmem>>, vector<1x128xf32>
    %c0_13 = arith.constant 0 : index
    %c0_14 = arith.constant 0 : index
    %15 = vector.load %arg7[%c0_13, %c0_14] : memref<1x128xf32, #tpu.memory_space<vmem>>, vector<1x128xf32>
    %cst_15 = arith.constant dense<0.000000e+00> : vector<64xf32>
    %16 = vector.multi_reduction <add>, %13, %cst_15 [1] : vector<64x128xf32> to vector<64xf32>
    %17 = vector.shape_cast %16 : vector<64xf32> to vector<64x1xf32>
    %18 = arith.mulf %13, %13 : vector<64x128xf32>
    %cst_16 = arith.constant dense<0.000000e+00> : vector<64xf32>
    %19 = vector.multi_reduction <add>, %18, %cst_16 [1] : vector<64x128xf32> to vector<64xf32>
    %20 = vector.shape_cast %19 : vector<64xf32> to vector<64x1xf32>
    %cst_17 = arith.constant 7.812500e-03 : f32
    %21 = vector.broadcast %cst_17 : f32 to vector<64x1xf32>
    %22 = arith.mulf %17, %21 : vector<64x1xf32>
    %23 = arith.mulf %22, %17 : vector<64x1xf32>
    %24 = arith.subf %20, %23 : vector<64x1xf32>
    %cst_18 = arith.constant 0.000000e+00 : f32
    %25 = vector.broadcast %cst_18 : f32 to vector<64x1xf32>
    %26 = arith.maximumf %24, %25 : vector<64x1xf32>
    %cst_19 = arith.constant 1.270000e+02 : f32
    %27 = vector.broadcast %cst_19 : f32 to vector<64x1xf32>
    %28 = arith.divf %26, %27 : vector<64x1xf32>
    %29 = math.sqrt %28 : vector<64x1xf32>
    %cst_20 = arith.constant 9.99999997E-7 : f32
    %30 = vector.broadcast %cst_20 : f32 to vector<64x1xf32>
    %31 = arith.addf %29, %30 : vector<64x1xf32>
    %cst_21 = arith.constant 1.000000e+00 : f32
    %32 = vector.broadcast %cst_21 : f32 to vector<64x1xf32>
    %33 = arith.divf %32, %31 : vector<64x1xf32>
    %34 = vector.broadcast %22 : vector<64x1xf32> to vector<64x128xf32>
    %35 = arith.subf %13, %34 : vector<64x128xf32>
    %36 = vector.broadcast %33 : vector<64x1xf32> to vector<64x128xf32>
    %37 = arith.mulf %35, %36 : vector<64x128xf32>
    %38 = vector.broadcast %14 : vector<1x128xf32> to vector<64x128xf32>
    %39 = arith.mulf %38, %37 : vector<64x128xf32>
    %40 = vector.broadcast %15 : vector<1x128xf32> to vector<64x128xf32>
    %41 = arith.addf %39, %40 : vector<64x128xf32>
    %c0_22 = arith.constant 0 : index
    %c0_23 = arith.constant 0 : index
    %42 = vector.load %arg8[%c0_22, %c0_23] : memref<64x128xf32, #tpu.memory_space<vmem>>, vector<64x128xf32>
    tpu.vector_store %arg8[%c0_22, %c0_23], %41 {strides = array<i32>} : memref<64x128xf32, #tpu.memory_space<vmem>>, vector<64x128xf32>,
    return
  }
  func.func @transform_0(%arg0: i32) -> (i32, i32) {
    %c0_i32 = arith.constant 0 : i32
    %c0_i32_0 = arith.constant 0 : i32
    return %arg0, %c0_i32 : i32, i32
  }
  func.func @transform_1(%arg0: i32) -> (i32, i32) {
    %c0_i32 = arith.constant 0 : i32
    %c0_i32_0 = arith.constant 0 : i32
    %c0_i32_1 = arith.constant 0 : i32
    return %c0_i32, %c0_i32_0 : i32, i32
  }
  func.func @transform_2(%arg0: i32) -> (i32, i32) {
    %c0_i32 = arith.constant 0 : i32
    %c0_i32_0 = arith.constant 0 : i32
    %c0_i32_1 = arith.constant 0 : i32
    return %c0_i32, %c0_i32_0 : i32, i32
  }
  func.func @transform_3(%arg0: i32) -> (i32, i32) {
    %c0_i32 = arith.constant 0 : i32
    %c0_i32_0 = arith.constant 0 : i32
    %c0_i32_1 = arith.constant 0 : i32
    return %c0_i32, %c0_i32_0 : i32, i32
  }
  func.func @transform_4(%arg0: i32) -> (i32, i32) {
    %c0_i32 = arith.constant 0 : i32
    %c0_i32_0 = arith.constant 0 : i32
    %c0_i32_1 = arith.constant 0 : i32
    return %c0_i32, %c0_i32_0 : i32, i32
  }
  func.func @transform_5(%arg0: i32) -> (i32, i32) {
    %c0_i32 = arith.constant 0 : i32
    %c0_i32_0 = arith.constant 0 : i32
    %c0_i32_1 = arith.constant 0 : i32
    return %c0_i32, %c0_i32_0 : i32, i32
  }
  func.func @transform_6(%arg0: i32) -> (i32, i32) {
    %c0_i32 = arith.constant 0 : i32
    %c0_i32_0 = arith.constant 0 : i32
    %c0_i32_1 = arith.constant 0 : i32
    return %c0_i32, %c0_i32_0 : i32, i32
  }
  func.func @transform_7(%arg0: i32) -> (i32, i32) {
    %c0_i32 = arith.constant 0 : i32
    %c0_i32_0 = arith.constant 0 : i32
    return %arg0, %c0_i32 : i32, i32
  }
}

</mosaic_0001>

<llo_original>
// kernel: tpu_custom_call.1
$region0: #{tpu_custom_call.1}
  #allocation0 [shape = 'u32[]', space=smem, size = 0x4, offset = 0x4, fixed_abs, tag = 'smem constant byte address 0x4 - core index']
  #allocation1 [shape = 'u32[72,128]{1,0:T(1,128)}', space=vmem, size = 0x9000, scoped, tag = 'internal scratch']
  %s0 = inlined_call_operand.hbm [shape: f32[144,128], index: 0, kind: input, shape index: {}]
  %s1 = inlined_call_operand.hbm [shape: f32[128,512], index: 1, kind: input, shape index: {}]
  %s2 = inlined_call_operand.hbm [shape: f32[1,512], index: 2, kind: input, shape index: {}]
  %s3 = inlined_call_operand.hbm [shape: f32[512,128], index: 3, kind: input, shape index: {}]
  %s4 = inlined_call_operand.vmem [shape: f32[1,128], index: 4, kind: input, shape index: {}]
  %s5 = inlined_call_operand.vmem [shape: f32[1,128], index: 5, kind: input, shape index: {}]
  %s6 = inlined_call_operand.vmem [shape: f32[1,128], index: 6, kind: input, shape index: {}]
  %s7 = inlined_call_operand.hbm [shape: f32[144,128], index: 7, kind: output, shape index: {}]
  %s8 = sld [smem:[#allocation0]]
  $region77: #{tpu_custom_call.1} parent=0
    _
  %s10 = ssub.s32 1, %s8
  %s11 = scalar_select 0, %s10, %s8
  $region1: #{tpu_custom_call.1} parent=0
    #allocation2 [shape = 'u8[65536]{0}', space=vmem, size = 0x10000, scoped, tag = 'input window, operand 0']
    #allocation3 [shape = 's32[2]{0}', space=sflag, size = 0x8, scoped, tag = 'scoped memory for tpu_custom_call.1']
    #allocation4 [shape = 's32[2]{0}', space=sflag, size = 0x8, scoped, tag = 'scoped memory for tpu_custom_call.1']
    #allocation5 [shape = 'u8[262144]{0}', space=vmem, size = 0x40000, scoped, tag = 'input window, operand 1, single buffered']
    #allocation6 [shape = 's32[1]{0}', space=sflag, size = 0x4, scoped, tag = 'scoped memory for tpu_custom_call.1']
    #allocation7 [shape = 'u8[2048]{0}', space=vmem, size = 0x800, scoped, tag = 'input window, operand 2, single buffered']
    #allocation8 [shape = 'u8[262144]{0}', space=vmem, size = 0x40000, scoped, tag = 'input window, operand 3, single buffered']
    #allocation9 [shape = 's32[1]{0}', space=sflag, size = 0x4, scoped, tag = 'scoped memory for tpu_custom_call.1']
    #allocation10 [shape = 'u8[65536]{0}', space=vmem, size = 0x10000, scoped, tag = 'output window, operand 0']
    %12 = vsyncpa [#allocation3], 0
    %s13 = scalar_lea.sflag [#allocation3], 1
    %14 = vsyncpa %s13, 0
    %15 = vsyncpa [#allocation6], 0
    %16 = vsyncpa [#allocation9], 0
    %17 = vsyncpa [#allocation4], 0
    %s18 = scalar_lea.sflag [#allocation4], 1
    %19 = vsyncpa %s18, 0
    loop: start=0, step=1, limit=5
    $region2: #{tpu_custom_call.1} parent=1 // loop_pre_header
      _
    $region3: #{tpu_custom_call.1} parent=1 // loop_header
      %s21 = sphi 0, %s25
      %p22 = scmp.ge.s32.totalorder %s21, 5
      %s31 = sphi 0, %s33
      %s34 = sphi 0, %s31
      %s35 = sphi 0, %s34
      %s51 = sphi 0, %s35
      %s55 = sphi 0, %s55
      %s57 = sphi 0, %s55
      %s58 = sphi 0, %s57
      %s72 = sphi 0, %s58
      %s76 = sphi 0, %s76
      %s78 = sphi 0, %s76
      %s79 = sphi 0, %s78
      %s93 = sphi 0, %s79
      %s97 = sphi 0, %s97
      %s99 = sphi 0, %s97
      %s100 = sphi 0, %s99
      %s114 = sphi 0, %s100
      %s118 = sphi 0, %s118
      %s120 = sphi 0, %s118
      %s121 = sphi 0, %s120
      %s135 = sphi 0, %s121
      %s139 = sphi 0, %s139
      %s141 = sphi 0, %s139
      %s142 = sphi 0, %s141
      %s156 = sphi 0, %s142
      %s160 = sphi 0, %s160
      %s162 = sphi 0, %s160
      %s163 = sphi 0, %s162
      %s177 = sphi 0, %s163
      %s183 = sphi 0, %s185
      %s186 = sphi 0, %s183
      %s187 = sphi 0, %s186
      %s203 = sphi 0, %s187
    $region4: #{tpu_custom_call.1} parent=1 // loop_header_branch
      %24 = sbr.rel (%p22) target = $region8
    $region5: #{tpu_custom_call.1} parent=1 // loop_body
      %s26 = ssub.s32 %s21, 1
      %s27 = ssub.s32 %s21, 2
      %s28 = sadd.s32 %s21, 1
      %s29 = ssub.s32 %s21, %s28
      %p30 = scmp.eq.s32.totalorder %s29, 0
      %s32 = sadd.s32 %s31, 1
      %s33 = scalar_select %p30, %s31, %s32
      %p36 = pneg %p30
      %p37 = scmp.eq.s32.totalorder %s21, 2
      %p38 = por %p36, %p37
      %p39 = scmp.ne.s32.totalorder %s31, %s34
      %p40 = scmp.eq.s32.totalorder %s21, 0
      %p41 = por %p39, %p40
      %p42 = scmp.ne.s32.totalorder %s31, %s34
      %p43 = scmp.eq.s32.totalorder %s26, 2
      %p44 = por %p42, %p43
      %p45 = scmp.ne.s32.totalorder %s34, %s35
      %p46 = scmp.eq.s32.totalorder %s26, 0
      %p47 = por %p45, %p46
      %p48 = scmp.ne.s32.totalorder %s34, %s35
      %p49 = scmp.eq.s32.totalorder %s27, 2
      %p50 = por %p48, %p49
      %p52 = scmp.ne.s32.totalorder %s35, %s51
      %p53 = scmp.eq.s32.totalorder %s27, 0
      %p54 = por %p52, %p53
      %s56 = sadd.s32 %s55, 1
      %p59 = scmp.eq.s32.totalorder %s21, 2
      %p60 = scmp.ne.s32.totalorder %s55, %s57
      %p61 = scmp.eq.s32.totalorder %s21, 0
      %p62 = por %p60, %p61
      %p63 = scmp.ne.s32.totalorder %s55, %s57
      %p64 = scmp.eq.s32.totalorder %s26, 2
      %p65 = por %p63, %p64
      %p66 = scmp.ne.s32.totalorder %s57, %s58
      %p67 = scmp.eq.s32.totalorder %s26, 0
      %p68 = por %p66, %p67
      %p69 = scmp.ne.s32.totalorder %s57, %s58
      %p70 = scmp.eq.s32.totalorder %s27, 2
      %p71 = por %p69, %p70
      %p73 = scmp.ne.s32.totalorder %s58, %s72
      %p74 = scmp.eq.s32.totalorder %s27, 0
      %p75 = por %p73, %p74
      %s77 = sadd.s32 %s76, 1
      %p80 = scmp.eq.s32.totalorder %s21, 2
      %p81 = scmp.ne.s32.totalorder %s76, %s78
      %p82 = scmp.eq.s32.totalorder %s21, 0
      %p83 = por %p81, %p82
      %p84 = scmp.ne.s32.totalorder %s76, %s78
      %p85 = scmp.eq.s32.totalorder %s26, 2
      %p86 = por %p84, %p85
      %p87 = scmp.ne.s32.totalorder %s78, %s79
      %p88 = scmp.eq.s32.totalorder %s26, 0
      %p89 = por %p87, %p88
      %p90 = scmp.ne.s32.totalorder %s78, %s79
      %p91 = scmp.eq.s32.totalorder %s27, 2
      %p92 = por %p90, %p91
      %p94 = scmp.ne.s32.totalorder %s79, %s93
      %p95 = scmp.eq.s32.totalorder %s27, 0
      %p96 = por %p94, %p95
      %s98 = sadd.s32 %s97, 1
      %p101 = scmp.eq.s32.totalorder %s21, 2
      %p102 = scmp.ne.s32.totalorder %s97, %s99
      %p103 = scmp.eq.s32.totalorder %s21, 0
      %p104 = por %p102, %p103
      %p105 = scmp.ne.s32.totalorder %s97, %s99
      %p106 = scmp.eq.s32.totalorder %s26, 2
      %p107 = por %p105, %p106
      %p108 = scmp.ne.s32.totalorder %s99, %s100
      %p109 = scmp.eq.s32.totalorder %s26, 0
      %p110 = por %p108, %p109
      %p111 = scmp.ne.s32.totalorder %s99, %s100
      %p112 = scmp.eq.s32.totalorder %s27, 2
      %p113 = por %p111, %p112
      %p115 = scmp.ne.s32.totalorder %s100, %s114
      %p116 = scmp.eq.s32.totalorder %s27, 0
      %p117 = por %p115, %p116
      %s119 = sadd.s32 %s118, 1
      %p122 = scmp.eq.s32.totalorder %s21, 2
      %p123 = scmp.ne.s32.totalorder %s118, %s120
      %p124 = scmp.eq.s32.totalorder %s21, 0
      %p125 = por %p123, %p124
      %p126 = scmp.ne.s32.totalorder %s118, %s120
      %p127 = scmp.eq.s32.totalorder %s26, 2
      %p128 = por %p126, %p127
      %p129 = scmp.ne.s32.totalorder %s120, %s121
      %p130 = scmp.eq.s32.totalorder %s26, 0
      %p131 = por %p129, %p130
      %p132 = scmp.ne.s32.totalorder %s120, %s121
      %p133 = scmp.eq.s32.totalorder %s27, 2
      %p134 = por %p132, %p133
      %p136 = scmp.ne.s32.totalorder %s121, %s135
      %p137 = scmp.eq.s32.totalorder %s27, 0
      %p138 = por %p136, %p137
      %s140 = sadd.s32 %s139, 1
      %p143 = scmp.eq.s32.totalorder %s21, 2
      %p144 = scmp.ne.s32.totalorder %s139, %s141
      %p145 = scmp.eq.s32.totalorder %s21, 0
      %p146 = por %p144, %p145
      %p147 = scmp.ne.s32.totalorder %s139, %s141
      %p148 = scmp.eq.s32.totalorder %s26, 2
      %p149 = por %p147, %p148
      %p150 = scmp.ne.s32.totalorder %s141, %s142
      %p151 = scmp.eq.s32.totalorder %s26, 0
      %p152 = por %p150, %p151
      %p153 = scmp.ne.s32.totalorder %s141, %s142
      %p154 = scmp.eq.s32.totalorder %s27, 2
      %p155 = por %p153, %p154
      %p157 = scmp.ne.s32.totalorder %s142, %s156
      %p158 = scmp.eq.s32.totalorder %s27, 0
      %p159 = por %p157, %p158
      %s161 = sadd.s32 %s160, 1
      %p164 = scmp.eq.s32.totalorder %s21, 2
      %p165 = scmp.ne.s32.totalorder %s160, %s162
      %p166 = scmp.eq.s32.totalorder %s21, 0
      %p167 = por %p165, %p166
      %p168 = scmp.ne.s32.totalorder %s160, %s162
      %p169 = scmp.eq.s32.totalorder %s26, 2
      %p170 = por %p168, %p169
      %p171 = scmp.ne.s32.totalorder %s162, %s163
      %p172 = scmp.eq.s32.totalorder %s26, 0
      %p173 = por %p171, %p172
      %p174 = scmp.ne.s32.totalorder %s162, %s163
      %p175 = scmp.eq.s32.totalorder %s27, 2
      %p176 = por %p174, %p175
      %p178 = scmp.ne.s32.totalorder %s163, %s177
      %p179 = scmp.eq.s32.totalorder %s27, 0
      %p180 = por %p178, %p179
      %s181 = ssub.s32 %s21, %s28
      %p182 = scmp.eq.s32.totalorder %s181, 0
      %s184 = sadd.s32 %s183, 1
      %s185 = scalar_select %p182, %s183, %s184
      %p188 = pneg %p182
      %p189 = scmp.eq.s32.totalorder %s21, 2
      %p190 = por %p188, %p189
      %p191 = scmp.ne.s32.totalorder %s183, %s186
      %p192 = scmp.eq.s32.totalorder %s21, 0
      %p193 = por %p191, %p192
      %p194 = scmp.ne.s32.totalorder %s183, %s186
      %p195 = scmp.eq.s32.totalorder %s26, 2
      %p196 = por %p194, %p195
      %p197 = scmp.ne.s32.totalorder %s186, %s187
      %p198 = scmp.eq.s32.totalorder %s26, 0
      %p199 = por %p197, %p198
      %p200 = scmp.ne.s32.totalorder %s186, %s187
      %p201 = scmp.eq.s32.totalorder %s27, 2
      %p202 = por %p200, %p201
      %p204 = scmp.ne.s32.totalorder %s187, %s203
      %p205 = scmp.eq.s32.totalorder %s27, 0
      %p206 = por %p204, %p205
      %p207 = scmp.le.s32.totalorder 1, %s21
      %p208 = scmp.lt.s32.totalorder %s21, 4
      %p209 = pnand %p207, %p208
      %p210 = pneg %p209
      // Predicated region
      $region9: #{tpu_custom_call.1} parent=5 // pred_check
        _
      $region10: #{tpu_custom_call.1} parent=5 // pred_check_branch
        %212 = sbr.rel (%p209) target = $region12
      $region11: #{tpu_custom_call.1} parent=5 // pred_region
        %s213 = ssub.s32 %s21, 1
        // Predicated region
        $region13: #{tpu_custom_call.1} parent=11 // pred_check
          %p214 = pneg %p68
        $region14: #{tpu_custom_call.1} parent=11 // pred_check_branch
          %216 = sbr.rel (%p214) target = $region16
        $region15: #{tpu_custom_call.1} parent=11 // pred_region
          %218 = vsyncadd [#allocation6], 0
          %s219 = sshll.u32 %s1, 4
          %s220 = int_to_ptr.hbm [resolvable:$true] %s219
          %s221 = sshll.u32 [#allocation5], 4
          %s222 = int_to_ptr.vmem [resolvable:$true] %s221
          %227 = dma.hbm_to_vmem [thread:$0]  %s220, 8192, %s222, [#allocation6], 512, 512, 32
        $region16: #{tpu_custom_call.1} parent=11 // pred_fallthru
          _
        // Predicated region
        $region17: #{tpu_custom_call.1} parent=11 // pred_check
          %p228 = pneg %p89
        $region18: #{tpu_custom_call.1} parent=11 // pred_check_branch
          %230 = sbr.rel (%p228) target = $region20
        $region19: #{tpu_custom_call.1} parent=11 // pred_region
          %232 = vsyncadd [#allocation6], 0
          %s234 = sshll.u32 %s2, 4
          %s235 = int_to_ptr.hbm [resolvable:$true] %s234
          %s236 = sshll.u32 [#allocation7], 4
          %s237 = int_to_ptr.vmem [resolvable:$true] %s236
          %239 = dma.hbm_to_vmem [thread:$0]  %s235, 64, %s237, [#allocation6]
        $region20: #{tpu_custom_call.1} parent=11 // pred_fallthru
          _
        // Predicated region
        $region21: #{tpu_custom_call.1} parent=11 // pred_check
          %p240 = pneg %p110
        $region22: #{tpu_custom_call.1} parent=11 // pred_check_branch
          %242 = sbr.rel (%p240) target = $region24
        $region23: #{tpu_custom_call.1} parent=11 // pred_region
          %244 = vsyncadd [#allocation9], 0
          %s245 = sshll.u32 %s3, 4
          %s246 = int_to_ptr.hbm [resolvable:$true] %s245
          %s247 = sshll.u32 [#allocation8], 4
          %s248 = int_to_ptr.vmem [resolvable:$true] %s247
          %253 = dma.hbm_to_vmem [thread:$0]  %s246, 8192, %s248, [#allocation9], 128, 128, 8
        $region24: #{tpu_custom_call.1} parent=11 // pred_fallthru
          _
        // Predicated region
        $region25: #{tpu_custom_call.1} parent=11 // pred_check
          %p254 = pneg %p131
        $region26: #{tpu_custom_call.1} parent=11 // pred_check_branch
          %256 = sbr.rel (%p254) target = $region28
        $region27: #{tpu_custom_call.1} parent=11 // pred_region
          _
        $region28: #{tpu_custom_call.1} parent=11 // pred_fallthru
          _
        // Predicated region
        $region29: #{tpu_custom_call.1} parent=11 // pred_check
          %p257 = pneg %p152
        $region30: #{tpu_custom_call.1} parent=11 // pred_check_branch
          %259 = sbr.rel (%p257) target = $region32
        $region31: #{tpu_custom_call.1} parent=11 // pred_region
          _
        $region32: #{tpu_custom_call.1} parent=11 // pred_fallthru
          _
        // Predicated region
        $region33: #{tpu_custom_call.1} parent=11 // pred_check
          %p260 = pneg %p173
        $region34: #{tpu_custom_call.1} parent=11 // pred_check_branch
          %262 = sbr.rel (%p260) target = $region36
        $region35: #{tpu_custom_call.1} parent=11 // pred_region
          _
        $region36: #{tpu_custom_call.1} parent=11 // pred_fallthru
          _
      $region12: #{tpu_custom_call.1} parent=5 // pred_fallthru
        _
      %p263 = scmp.lt.s32.totalorder %s21, 3
      // Predicated region
      $region37: #{tpu_custom_call.1} parent=5 // pred_check
        %p264 = pneg %p263
      $region38: #{tpu_custom_call.1} parent=5 // pred_check_branch
        %266 = sbr.rel (%p264) target = $region40
      $region39: #{tpu_custom_call.1} parent=5 // pred_region
        // Predicated region
        $region41: #{tpu_custom_call.1} parent=39 // pred_check
          %p267 = pneg %p41
        $region42: #{tpu_custom_call.1} parent=39 // pred_check_branch
          %269 = sbr.rel (%p267) target = $region44
        $region43: #{tpu_custom_call.1} parent=39 // pred_region
          %s270 = sand.u32 %s31, 1
          %s271 = scalar_lea.sflag [#allocation3], %s270
          %s272 = sand.u32 %s31, 1
          %s273 = smul.addr %s272, 64
          %s274 = scalar_lea.vmem [#allocation2], %s273
          %s275 = smul.u32 8, %s21
          %s276 = ssub.s32 18, %s275
          %p277 = scmp.lt.s32.totalorder %s276, 8
          %s278 = scalar_select %p277, %s276, 8
          %s279 = smul.u32 8, %s278
          %s280 = ssub.s32 64, %s279
          %s281 = sshll.u32 %s280, 4
          %282 = vsyncadd %s271, %s281
          %p283 = scmp.ne.s32.totalorder 0, %s279
          %s284 = smul.addr %s275, 8
          %s285 = scalar_lea.hbm %s0, %s284
          %s286 = smul.u32 8, %s278
          %s287 = sshll.u32 %s285, 4
          %s288 = int_to_ptr.hbm [resolvable:$true] %s287
          %s289 = sshll.u32 %s274, 4
          %s290 = int_to_ptr.vmem [resolvable:$true] %s289
          %s291 = sshll.u32 %s286, 4
          %295 = dma.hbm_to_vmem [thread:$0]  (%p283), %s288, %s291, %s290, %s271, 128, 128, 8
        $region44: #{tpu_custom_call.1} parent=39 // pred_fallthru
          _
      $region40: #{tpu_custom_call.1} parent=5 // pred_fallthru
        _
      %p296 = scmp.le.s32.totalorder 1, %s21
      %p297 = scmp.lt.s32.totalorder %s21, 4
      %p298 = pnand %p296, %p297
      %p299 = pneg %p298
      // Predicated region
      $region45: #{tpu_custom_call.1} parent=5 // pred_check
        _
      $region46: #{tpu_custom_call.1} parent=5 // pred_check_branch
        %301 = sbr.rel (%p298) target = $region48
      $region47: #{tpu_custom_call.1} parent=5 // pred_region
        %s302 = ssub.s32 %s21, 1
        %s303 = sand.u32 %s34, 1
        %s304 = scalar_lea.sflag [#allocation3], %s303
        %s305 = sand.u32 %s34, 1
        %s306 = smul.addr %s305, 64
        %s307 = scalar_lea.vmem [#allocation2], %s306
        // Predicated region
        $region49: #{tpu_custom_call.1} parent=47 // pred_check
          %p308 = pneg %p47
        $region50: #{tpu_custom_call.1} parent=47 // pred_check_branch
          %310 = sbr.rel (%p308) target = $region52
        $region51: #{tpu_custom_call.1} parent=47 // pred_region
          %312 = dma.done %s304, 1024
        $region52: #{tpu_custom_call.1} parent=47 // pred_fallthru
          _
        // Predicated region
        $region53: #{tpu_custom_call.1} parent=47 // pred_check
          %p313 = pneg %p68
        $region54: #{tpu_custom_call.1} parent=47 // pred_check_branch
          %315 = sbr.rel (%p313) target = $region56
        $region55: #{tpu_custom_call.1} parent=47 // pred_region
          %317 = dma.done [#allocation6], 8192
        $region56: #{tpu_custom_call.1} parent=47 // pred_fallthru
          _
        // Predicated region
        $region57: #{tpu_custom_call.1} parent=47 // pred_check
          %p318 = pneg %p89
        $region58: #{tpu_custom_call.1} parent=47 // pred_check_branch
          %320 = sbr.rel (%p318) target = $region60
        $region59: #{tpu_custom_call.1} parent=47 // pred_region
          %322 = dma.done [#allocation6], 64
        $region60: #{tpu_custom_call.1} parent=47 // pred_fallthru
          _
        // Predicated region
        $region61: #{tpu_custom_call.1} parent=47 // pred_check
          %p323 = pneg %p110
        $region62: #{tpu_custom_call.1} parent=47 // pred_check_branch
          %325 = sbr.rel (%p323) target = $region64
        $region63: #{tpu_custom_call.1} parent=47 // pred_region
          %327 = dma.done [#allocation9], 8192
        $region64: #{tpu_custom_call.1} parent=47 // pred_fallthru
          _
        %s328 = sand.u32 %s34, 1
        %s329 = scalar_lea.sflag [#allocation3], %s328
        %s330 = sand.u32 %s34, 1
        %s331 = smul.addr %s330, 64
        %s332 = scalar_lea.vmem [#allocation2], %s331
        %p333 = pneg %p47
        %p334 = pneg %p44
        %p335 = pneg %p68
        %p336 = pneg %p65
        %p337 = pneg %p89
        %p338 = pneg %p86
        %p339 = pneg %p110
        %p340 = pneg %p107
        %p341 = pneg %p131
        %p342 = pneg %p128
        %p343 = pneg %p152
        %p344 = pneg %p149
        %p345 = pneg %p173
        %p346 = pneg %p170
        %p347 = pneg %p199
        %p348 = pneg %p196
        %s349 = sand.u32 %s186, 1
        %s350 = scalar_lea.sflag [#allocation4], %s349
        %s351 = sand.u32 %s186, 1
        %s352 = smul.addr %s351, 64
        %s353 = scalar_lea.vmem [#allocation10], %s352
        %s354 = smul.u32 8, %s26
        %s355 = ssub.s32 18, %s354
        %p356 = scmp.lt.s32.totalorder %s355, 8
        %s357 = scalar_select %p356, %s355, 8
        %s358 = smul.u32 8, %s357
        %s359 = smul.u32 8, %s26
        %s360 = ssub.s32 18, %s359
        %p361 = scmp.lt.s32.totalorder %s360, 8
        %s362 = scalar_select %p361, %s360, 8
        %s363 = smul.u32 8, %s362
        %v364 = vld [vmem:[%s307] sm:$0xff]
        %v365 = vld [vmem:[%s307 + $0x8] sm:$0xff]
        %v366 = vld [vmem:[%s307 + $0x10] sm:$0xff]
        %v367 = vld [vmem:[%s307 + $0x18] sm:$0xff]
        %v368 = vld [vmem:[%s307 + $0x20] sm:$0xff]
        %v369 = vld [vmem:[%s307 + $0x28] sm:$0xff]
        %v370 = vld [vmem:[%s307 + $0x30] sm:$0xff]
        %v371 = vld [vmem:[%s307 + $0x38] sm:$0xff]
        %v372 = vld [vmem:[#allocation5] sm:$0xff]
        %v373 = vld [vmem:[#allocation5 + $0x8] sm:$0xff]
        %v374 = vld [vmem:[#allocation5 + $0x10] sm:$0xff]
        %v375 = vld [vmem:[#allocation5 + $0x18] sm:$0xff]
        %v376 = vld [vmem:[#allocation5 + $0x20] sm:$0xff]
        %v377 = vld [vmem:[#allocation5 + $0x28] sm:$0xff]
        %v378 = vld [vmem:[#allocation5 + $0x30] sm:$0xff]
        %v379 = vld [vmem:[#allocation5 + $0x38] sm:$0xff]
        %v380 = vld [vmem:[#allocation5 + $0x40] sm:$0xff]
        %v381 = vld [vmem:[#allocation5 + $0x48] sm:$0xff]
        %v382 = vld [vmem:[#allocation5 + $0x50] sm:$0xff]
        %v383 = vld [vmem:[#allocation5 + $0x58] sm:$0xff]
        %v384 = vld [vmem:[#allocation5 + $0x60] sm:$0xff]
        %v385 = vld [vmem:[#allocation5 + $0x68] sm:$0xff]
        %v386 = vld [vmem:[#allocation5 + $0x70] sm:$0xff]
        %v387 = vld [vmem:[#allocation5 + $0x78] sm:$0xff]
        %v388 = vld [vmem:[#allocation5 + $0x80] sm:$0xff]
        %v389 = vld [vmem:[#allocation5 + $0x88] sm:$0xff]
        %v390 = vld [vmem:[#allocation5 + $0x90] sm:$0xff]
        %v391 = vld [vmem:[#allocation5 + $0x98] sm:$0xff]
        %v392 = vld [vmem:[#allocation5 + $0xa0] sm:$0xff]
        %v393 = vld [vmem:[#allocation5 + $0xa8] sm:$0xff]
        %v394 = vld [vmem:[#allocation5 + $0xb0] sm:$0xff]
        %v395 = vld [vmem:[#allocation5 + $0xb8] sm:$0xff]
        %v396 = vld [vmem:[#allocation5 + $0xc0] sm:$0xff]
        %v397 = vld [vmem:[#allocation5 + $0xc8] sm:$0xff]
        %v398 = vld [vmem:[#allocation5 + $0xd0] sm:$0xff]
        %v399 = vld [vmem:[#allocation5 + $0xd8] sm:$0xff]
        %v400 = vld [vmem:[#allocation5 + $0xe0] sm:$0xff]
        %v401 = vld [vmem:[#allocation5 + $0xe8] sm:$0xff]
        %v402 = vld [vmem:[#allocation5 + $0xf0] sm:$0xff]
        %v403 = vld [vmem:[#allocation5 + $0xf8] sm:$0xff]
        %v404 = vld [vmem:[#allocation5 + $0x100] sm:$0xff]
        %v405 = vld [vmem:[#allocation5 + $0x108] sm:$0xff]
        %v406 = vld [vmem:[#allocation5 + $0x110] sm:$0xff]
        %v407 = vld [vmem:[#allocation5 + $0x118] sm:$0xff]
        %v408 = vld [vmem:[#allocation5 + $0x120] sm:$0xff]
        %v409 = vld [vmem:[#allocation5 + $0x128] sm:$0xff]
        %v410 = vld [vmem:[#allocation5 + $0x130] sm:$0xff]
        %v411 = vld [vmem:[#allocation5 + $0x138] sm:$0xff]
        %v412 = vld [vmem:[#allocation5 + $0x140] sm:$0xff]
        %v413 = vld [vmem:[#allocation5 + $0x148] sm:$0xff]
        %v414 = vld [vmem:[#allocation5 + $0x150] sm:$0xff]
        %v415 = vld [vmem:[#allocation5 + $0x158] sm:$0xff]
        %v416 = vld [vmem:[#allocation5 + $0x160] sm:$0xff]
        %v417 = vld [vmem:[#allocation5 + $0x168] sm:$0xff]
        %v418 = vld [vmem:[#allocation5 + $0x170] sm:$0xff]
        %v419 = vld [vmem:[#allocation5 + $0x178] sm:$0xff]
        %v420 = vld [vmem:[#allocation5 + $0x180] sm:$0xff]
        %v421 = vld [vmem:[#allocation5 + $0x188] sm:$0xff]
        %v422 = vld [vmem:[#allocation5 + $0x190] sm:$0xff]
        %v423 = vld [vmem:[#allocation5 + $0x198] sm:$0xff]
        %v424 = vld [vmem:[#allocation5 + $0x1a0] sm:$0xff]
        %v425 = vld [vmem:[#allocation5 + $0x1a8] sm:$0xff]
        %v426 = vld [vmem:[#allocation5 + $0x1b0] sm:$0xff]
        %v427 = vld [vmem:[#allocation5 + $0x1b8] sm:$0xff]
        %v428 = vld [vmem:[#allocation5 + $0x1c0] sm:$0xff]
        %v429 = vld [vmem:[#allocation5 + $0x1c8] sm:$0xff]
        %v430 = vld [vmem:[#allocation5 + $0x1d0] sm:$0xff]
        %v431 = vld [vmem:[#allocation5 + $0x1d8] sm:$0xff]
        %v432 = vld [vmem:[#allocation5 + $0x1e0] sm:$0xff]
        %v433 = vld [vmem:[#allocation5 + $0x1e8] sm:$0xff]
        %v434 = vld [vmem:[#allocation5 + $0x1f0] sm:$0xff]
        %v435 = vld [vmem:[#allocation5 + $0x1f8] sm:$0xff]
        %v436 = vld [vmem:[#allocation7] sm:$0xf]
        %v438 = vperm.slane %v436, 0
        %v439 = vperm.slane %v436, 1
        %v440 = vperm.slane %v436, 2
        %v441 = vperm.slane %v436, 3
        %446 = vmatpush.msra.mxu0 %v432
        %447 = vmatpush.msra.mxu0 %v428
        %448 = vmatpush.msra.mxu0 %v424
        %449 = vmatpush.msra.mxu0 %v420
        %450 = vmatpush.msra.mxu0 %v416
        %451 = vmatpush.msra.mxu0 %v412
        %452 = vmatpush.msra.mxu0 %v408
        %453 = vmatpush.msra.mxu0 %v404
        %454 = vmatpush.msra.mxu0 %v400
        %455 = vmatpush.msra.mxu0 %v396
        %456 = vmatpush.msra.mxu0 %v392
        %457 = vmatpush.msra.mxu0 %v388
        %458 = vmatpush.msra.mxu0 %v384
        %459 = vmatpush.msra.mxu0 %v380
        %460 = vmatpush.msra.mxu0 %v376
        %461 = vmatpush.msra.mxu0 %v372
        %462 = vmatmul.f32.gmra.mxu0 %v364
        %v463 = vpop.f32.mrf.mxu0
        %v464 = vadd.f32 %v438, %v463
        %465 = vmatmul.f32.gmra.mxu0 %v365
        %v466 = vpop.f32.mrf.mxu0
        %v467 = vadd.f32 %v438, %v466
        %468 = vmatmul.f32.gmra.mxu0 %v366
        %v469 = vpop.f32.mrf.mxu0
        %v470 = vadd.f32 %v438, %v469
        %471 = vmatmul.f32.gmra.mxu0 %v367
        %v472 = vpop.f32.mrf.mxu0
        %v473 = vadd.f32 %v438, %v472
        %474 = vmatmul.f32.gmra.mxu0 %v368
        %v475 = vpop.f32.mrf.mxu0
        %v476 = vadd.f32 %v438, %v475
        %477 = vmatmul.f32.gmra.mxu0 %v369
        %v478 = vpop.f32.mrf.mxu0
        %v479 = vadd.f32 %v438, %v478
        %480 = vmatmul.f32.gmra.mxu0 %v370
        %v481 = vpop.f32.mrf.mxu0
        %v482 = vadd.f32 %v438, %v481
        %483 = vmatmul.f32.gmra.mxu0 %v371
        %v484 = vpop.f32.mrf.mxu0
        %v485 = vadd.f32 %v438, %v484
        %486 = vdwg.mxu0
        %487 = vmatpush.msra.mxu0 %v433
        %488 = vmatpush.msra.mxu0 %v429
        %489 = vmatpush.msra.mxu0 %v425
        %490 = vmatpush.msra.mxu0 %v421
        %491 = vmatpush.msra.mxu0 %v417
        %492 = vmatpush.msra.mxu0 %v413
        %493 = vmatpush.msra.mxu0 %v409
        %494 = vmatpush.msra.mxu0 %v405
        %495 = vmatpush.msra.mxu0 %v401
        %496 = vmatpush.msra.mxu0 %v397
        %497 = vmatpush.msra.mxu0 %v393
        %498 = vmatpush.msra.mxu0 %v389
        %499 = vmatpush.msra.mxu0 %v385
        %500 = vmatpush.msra.mxu0 %v381
        %501 = vmatpush.msra.mxu0 %v377
        %502 = vmatpush.msra.mxu0 %v373
        %503 = vmatmul.f32.gmra.mxu0 %v364
        %v504 = vpop.f32.mrf.mxu0
        %v505 = vadd.f32 %v439, %v504
        %506 = vmatmul.f32.gmra.mxu0 %v365
        %v507 = vpop.f32.mrf.mxu0
        %v508 = vadd.f32 %v439, %v507
        %509 = vmatmul.f32.gmra.mxu0 %v366
        %v510 = vpop.f32.mrf.mxu0
        %v511 = vadd.f32 %v439, %v510
        %512 = vmatmul.f32.gmra.mxu0 %v367
        %v513 = vpop.f32.mrf.mxu0
        %v514 = vadd.f32 %v439, %v513
        %515 = vmatmul.f32.gmra.mxu0 %v368
        %v516 = vpop.f32.mrf.mxu0
        %v517 = vadd.f32 %v439, %v516
        %518 = vmatmul.f32.gmra.mxu0 %v369
        %v519 = vpop.f32.mrf.mxu0
        %v520 = vadd.f32 %v439, %v519
        %521 = vmatmul.f32.gmra.mxu0 %v370
        %v522 = vpop.f32.mrf.mxu0
        %v523 = vadd.f32 %v439, %v522
        %524 = vmatmul.f32.gmra.mxu0 %v371
        %v525 = vpop.f32.mrf.mxu0
        %v526 = vadd.f32 %v439, %v525
        %527 = vdwg.mxu0
        %528 = vmatpush.msra.mxu0 %v434
        %529 = vmatpush.msra.mxu0 %v430
        %530 = vmatpush.msra.mxu0 %v426
        %531 = vmatpush.msra.mxu0 %v422
        %532 = vmatpush.msra.mxu0 %v418
        %533 = vmatpush.msra.mxu0 %v414
        %534 = vmatpush.msra.mxu0 %v410
        %535 = vmatpush.msra.mxu0 %v406
        %536 = vmatpush.msra.mxu0 %v402
        %537 = vmatpush.msra.mxu0 %v398
        %538 = vmatpush.msra.mxu0 %v394
        %539 = vmatpush.msra.mxu0 %v390
        %540 = vmatpush.msra.mxu0 %v386
        %541 = vmatpush.msra.mxu0 %v382
        %542 = vmatpush.msra.mxu0 %v378
        %543 = vmatpush.msra.mxu0 %v374
        %544 = vmatmul.f32.gmra.mxu0 %v364
        %v545 = vpop.f32.mrf.mxu0
        %v546 = vadd.f32 %v440, %v545
        %547 = vmatmul.f32.gmra.mxu0 %v365
        %v548 = vpop.f32.mrf.mxu0
        %v549 = vadd.f32 %v440, %v548
        %550 = vmatmul.f32.gmra.mxu0 %v366
        %v551 = vpop.f32.mrf.mxu0
        %v552 = vadd.f32 %v440, %v551
        %553 = vmatmul.f32.gmra.mxu0 %v367
        %v554 = vpop.f32.mrf.mxu0
        %v555 = vadd.f32 %v440, %v554
        %556 = vmatmul.f32.gmra.mxu0 %v368
        %v557 = vpop.f32.mrf.mxu0
        %v558 = vadd.f32 %v440, %v557
        %559 = vmatmul.f32.gmra.mxu0 %v369
        %v560 = vpop.f32.mrf.mxu0
        %v561 = vadd.f32 %v440, %v560
        %562 = vmatmul.f32.gmra.mxu0 %v370
        %v563 = vpop.f32.mrf.mxu0
        %v564 = vadd.f32 %v440, %v563
        %565 = vmatmul.f32.gmra.mxu0 %v371
        %v566 = vpop.f32.mrf.mxu0
        %v567 = vadd.f32 %v440, %v566
        %568 = vdwg.mxu0
        %569 = vmatpush.msra.mxu0 %v435
        %570 = vmatpush.msra.mxu0 %v431
        %571 = vmatpush.msra.mxu0 %v427
        %572 = vmatpush.msra.mxu0 %v423
        %573 = vmatpush.msra.mxu0 %v419
        %574 = vmatpush.msra.mxu0 %v415
        %575 = vmatpush.msra.mxu0 %v411
        %576 = vmatpush.msra.mxu0 %v407
        %577 = vmatpush.msra.mxu0 %v403
        %578 = vmatpush.msra.mxu0 %v399
        %579 = vmatpush.msra.mxu0 %v395
        %580 = vmatpush.msra.mxu0 %v391
        %581 = vmatpush.msra.mxu0 %v387
        %582 = vmatpush.msra.mxu0 %v383
        %583 = vmatpush.msra.mxu0 %v379
        %584 = vmatpush.msra.mxu0 %v375
        %585 = vmatmul.f32.gmra.mxu0 %v364
        %v586 = vpop.f32.mrf.mxu0
        %v587 = vadd.f32 %v441, %v586
        %588 = vmatmul.f32.gmra.mxu0 %v365
        %v589 = vpop.f32.mrf.mxu0
        %v590 = vadd.f32 %v441, %v589
        %591 = vmatmul.f32.gmra.mxu0 %v366
        %v592 = vpop.f32.mrf.mxu0
        %v593 = vadd.f32 %v441, %v592
        %594 = vmatmul.f32.gmra.mxu0 %v367
        %v595 = vpop.f32.mrf.mxu0
        %v596 = vadd.f32 %v441, %v595
        %597 = vmatmul.f32.gmra.mxu0 %v368
        %v598 = vpop.f32.mrf.mxu0
        %v599 = vadd.f32 %v441, %v598
        %600 = vmatmul.f32.gmra.mxu0 %v369
        %v601 = vpop.f32.mrf.mxu0
        %v602 = vadd.f32 %v441, %v601
        %603 = vmatmul.f32.gmra.mxu0 %v370
        %v604 = vpop.f32.mrf.mxu0
        %v605 = vadd.f32 %v441, %v604
        %606 = vmatmul.f32.gmra.mxu0 %v371
        %v607 = vpop.f32.mrf.mxu0
        %v608 = vadd.f32 %v441, %v607
        %609 = vdwg.mxu0
        %v610 = vmax.f32 %v464, 0.0
        %v611 = vmax.f32 %v505, 0.0
        %v612 = vmax.f32 %v546, 0.0
        %v613 = vmax.f32 %v587, 0.0
        %v614 = vmax.f32 %v467, 0.0
        %v615 = vmax.f32 %v508, 0.0
        %v616 = vmax.f32 %v549, 0.0
        %v617 = vmax.f32 %v590, 0.0
        %v618 = vmax.f32 %v470, 0.0
        %v619 = vmax.f32 %v511, 0.0
        %v620 = vmax.f32 %v552, 0.0
        %v621 = vmax.f32 %v593, 0.0
        %v622 = vmax.f32 %v473, 0.0
        %v623 = vmax.f32 %v514, 0.0
        %v624 = vmax.f32 %v555, 0.0
        %v625 = vmax.f32 %v596, 0.0
        %v626 = vmax.f32 %v476, 0.0
        %v627 = vmax.f32 %v517, 0.0
        %v628 = vmax.f32 %v558, 0.0
        %v629 = vmax.f32 %v599, 0.0
        %v630 = vmax.f32 %v479, 0.0
        %v631 = vmax.f32 %v520, 0.0
        %v632 = vmax.f32 %v561, 0.0
        %v633 = vmax.f32 %v602, 0.0
        %v634 = vmax.f32 %v482, 0.0
        %v635 = vmax.f32 %v523, 0.0
        %v636 = vmax.f32 %v564, 0.0
        %v637 = vmax.f32 %v605, 0.0
        %v638 = vmax.f32 %v485, 0.0
        %v639 = vmax.f32 %v526, 0.0
        %v640 = vmax.f32 %v567, 0.0
        %v641 = vmax.f32 %v608, 0.0
        %v642 = vld [vmem:[#allocation8] sm:$0xff]
        %v643 = vld [vmem:[#allocation8 + $0x8] sm:$0xff]
        %v644 = vld [vmem:[#allocation8 + $0x10] sm:$0xff]
        %v645 = vld [vmem:[#allocation8 + $0x18] sm:$0xff]
        %v646 = vld [vmem:[#allocation8 + $0x20] sm:$0xff]
        %v647 = vld [vmem:[#allocation8 + $0x28] sm:$0xff]
        %v648 = vld [vmem:[#allocation8 + $0x30] sm:$0xff]
        %v649 = vld [vmem:[#allocation8 + $0x38] sm:$0xff]
        %v650 = vld [vmem:[#allocation8 + $0x40] sm:$0xff]
        %v651 = vld [vmem:[#allocation8 + $0x48] sm:$0xff]
        %v652 = vld [vmem:[#allocation8 + $0x50] sm:$0xff]
        %v653 = vld [vmem:[#allocation8 + $0x58] sm:$0xff]
        %v654 = vld [vmem:[#allocation8 + $0x60] sm:$0xff]
        %v655 = vld [vmem:[#allocation8 + $0x68] sm:$0xff]
        %v656 = vld [vmem:[#allocation8 + $0x70] sm:$0xff]
        %v657 = vld [vmem:[#allocation8 + $0x78] sm:$0xff]
        %v658 = vld [vmem:[#allocation8 + $0x80] sm:$0xff]
        %v659 = vld [vmem:[#allocation8 + $0x88] sm:$0xff]
        %v660 = vld [vmem:[#allocation8 + $0x90] sm:$0xff]
        %v661 = vld [vmem:[#allocation8 + $0x98] sm:$0xff]
        %v662 = vld [vmem:[#allocation8 + $0xa0] sm:$0xff]
        %v663 = vld [vmem:[#allocation8 + $0xa8] sm:$0xff]
        %v664 = vld [vmem:[#allocation8 + $0xb0] sm:$0xff]
        %v665 = vld [vmem:[#allocation8 + $0xb8] sm:$0xff]
        %v666 = vld [vmem:[#allocation8 + $0xc0] sm:$0xff]
        %v667 = vld [vmem:[#allocation8 + $0xc8] sm:$0xff]
        %v668 = vld [vmem:[#allocation8 + $0xd0] sm:$0xff]
        %v669 = vld [vmem:[#allocation8 + $0xd8] sm:$0xff]
        %v670 = vld [vmem:[#allocation8 + $0xe0] sm:$0xff]
        %v671 = vld [vmem:[#allocation8 + $0xe8] sm:$0xff]
        %v672 = vld [vmem:[#allocation8 + $0xf0] sm:$0xff]
        %v673 = vld [vmem:[#allocation8 + $0xf8] sm:$0xff]
        %v674 = vld [vmem:[#allocation8 + $0x100] sm:$0xff]
        %v675 = vld [vmem:[#allocation8 + $0x108] sm:$0xff]
        %v676 = vld [vmem:[#allocation8 + $0x110] sm:$0xff]
        %v677 = vld [vmem:[#allocation8 + $0x118] sm:$0xff]
        %v678 = vld [vmem:[#allocation8 + $0x120] sm:$0xff]
        %v679 = vld [vmem:[#allocation8 + $0x128] sm:$0xff]
        %v680 = vld [vmem:[#allocation8 + $0x130] sm:$0xff]
        %v681 = vld [vmem:[#allocation8 + $0x138] sm:$0xff]
        %v682 = vld [vmem:[#allocation8 + $0x140] sm:$0xff]
        %v683 = vld [vmem:[#allocation8 + $0x148] sm:$0xff]
        %v684 = vld [vmem:[#allocation8 + $0x150] sm:$0xff]
        %v685 = vld [vmem:[#allocation8 + $0x158] sm:$0xff]
        %v686 = vld [vmem:[#allocation8 + $0x160] sm:$0xff]
        %v687 = vld [vmem:[#allocation8 + $0x168] sm:$0xff]
        %v688 = vld [vmem:[#allocation8 + $0x170] sm:$0xff]
        %v689 = vld [vmem:[#allocation8 + $0x178] sm:$0xff]
        %v690 = vld [vmem:[#allocation8 + $0x180] sm:$0xff]
        %v691 = vld [vmem:[#allocation8 + $0x188] sm:$0xff]
        %v692 = vld [vmem:[#allocation8 + $0x190] sm:$0xff]
        %v693 = vld [vmem:[#allocation8 + $0x198] sm:$0xff]
        %v694 = vld [vmem:[#allocation8 + $0x1a0] sm:$0xff]
        %v695 = vld [vmem:[#allocation8 + $0x1a8] sm:$0xff]
        %v696 = vld [vmem:[#allocation8 + $0x1b0] sm:$0xff]
        %v697 = vld [vmem:[#allocation8 + $0x1b8] sm:$0xff]
        %v698 = vld [vmem:[#allocation8 + $0x1c0] sm:$0xff]
        %v699 = vld [vmem:[#allocation8 + $0x1c8] sm:$0xff]
        %v700 = vld [vmem:[#allocation8 + $0x1d0] sm:$0xff]
        %v701 = vld [vmem:[#allocation8 + $0x1d8] sm:$0xff]
        %v702 = vld [vmem:[#allocation8 + $0x1e0] sm:$0xff]
        %v703 = vld [vmem:[#allocation8 + $0x1e8] sm:$0xff]
        %v704 = vld [vmem:[#allocation8 + $0x1f0] sm:$0xff]
        %v705 = vld [vmem:[#allocation8 + $0x1f8] sm:$0xff]
        %v706 = vld [vmem:[%s4] sm:$0x1]
        %v708 = vperm.slane %v706, 0
        %710 = vmatpush.msra.mxu0 %v657
        %711 = vmatpush.msra.mxu0 %v656
        %712 = vmatpush.msra.mxu0 %v655
        %713 = vmatpush.msra.mxu0 %v654
        %714 = vmatpush.msra.mxu0 %v653
        %715 = vmatpush.msra.mxu0 %v652
        %716 = vmatpush.msra.mxu0 %v651
        %717 = vmatpush.msra.mxu0 %v650
        %718 = vmatpush.msra.mxu0 %v649
        %719 = vmatpush.msra.mxu0 %v648
        %720 = vmatpush.msra.mxu0 %v647
        %721 = vmatpush.msra.mxu0 %v646
        %722 = vmatpush.msra.mxu0 %v645
        %723 = vmatpush.msra.mxu0 %v644
        %724 = vmatpush.msra.mxu0 %v643
        %725 = vmatpush.msra.mxu0 %v642
        %726 = vmatmul.f32.gmra.mxu0 %v610
        %v727 = vpop.f32.mrf.mxu0
        %v728 = vadd.f32 %v708, %v727
        %729 = vmatmul.f32.gmra.mxu0 %v614
        %v730 = vpop.f32.mrf.mxu0
        %v731 = vadd.f32 %v708, %v730
        %732 = vmatmul.f32.gmra.mxu0 %v618
        %v733 = vpop.f32.mrf.mxu0
        %v734 = vadd.f32 %v708, %v733
        %735 = vmatmul.f32.gmra.mxu0 %v622
        %v736 = vpop.f32.mrf.mxu0
        %v737 = vadd.f32 %v708, %v736
        %738 = vmatmul.f32.gmra.mxu0 %v626
        %v739 = vpop.f32.mrf.mxu0
        %v740 = vadd.f32 %v708, %v739
        %741 = vmatmul.f32.gmra.mxu0 %v630
        %v742 = vpop.f32.mrf.mxu0
        %v743 = vadd.f32 %v708, %v742
        %744 = vmatmul.f32.gmra.mxu0 %v634
        %v745 = vpop.f32.mrf.mxu0
        %v746 = vadd.f32 %v708, %v745
        %747 = vmatmul.f32.gmra.mxu0 %v638
        %v748 = vpop.f32.mrf.mxu0
        %v749 = vadd.f32 %v708, %v748
        %750 = vdwg.mxu0
        %751 = vmatpush.msra.mxu0 %v673
        %752 = vmatpush.msra.mxu0 %v672
        %753 = vmatpush.msra.mxu0 %v671
        %754 = vmatpush.msra.mxu0 %v670
        %755 = vmatpush.msra.mxu0 %v669
        %756 = vmatpush.msra.mxu0 %v668
        %757 = vmatpush.msra.mxu0 %v667
        %758 = vmatpush.msra.mxu0 %v666
        %759 = vmatpush.msra.mxu0 %v665
        %760 = vmatpush.msra.mxu0 %v664
        %761 = vmatpush.msra.mxu0 %v663
        %762 = vmatpush.msra.mxu0 %v662
        %763 = vmatpush.msra.mxu0 %v661
        %764 = vmatpush.msra.mxu0 %v660
        %765 = vmatpush.msra.mxu0 %v659
        %766 = vmatpush.msra.mxu0 %v658
        %767 = vmatmul.f32.gmra.mxu0 %v611
        %v768 = vpop.f32.mrf.mxu0
        %v769 = vadd.f32 %v728, %v768
        %770 = vmatmul.f32.gmra.mxu0 %v615
        %v771 = vpop.f32.mrf.mxu0
        %v772 = vadd.f32 %v731, %v771
        %773 = vmatmul.f32.gmra.mxu0 %v619
        %v774 = vpop.f32.mrf.mxu0
        %v775 = vadd.f32 %v734, %v774
        %776 = vmatmul.f32.gmra.mxu0 %v623
        %v777 = vpop.f32.mrf.mxu0
        %v778 = vadd.f32 %v737, %v777
        %779 = vmatmul.f32.gmra.mxu0 %v627
        %v780 = vpop.f32.mrf.mxu0
        %v781 = vadd.f32 %v740, %v780
        %782 = vmatmul.f32.gmra.mxu0 %v631
        %v783 = vpop.f32.mrf.mxu0
        %v784 = vadd.f32 %v743, %v783
        %785 = vmatmul.f32.gmra.mxu0 %v635
        %v786 = vpop.f32.mrf.mxu0
        %v787 = vadd.f32 %v746, %v786
        %788 = vmatmul.f32.gmra.mxu0 %v639
        %v789 = vpop.f32.mrf.mxu0
        %v790 = vadd.f32 %v749, %v789
        %791 = vdwg.mxu0
        %792 = vmatpush.msra.mxu0 %v689
        %793 = vmatpush.msra.mxu0 %v688
        %794 = vmatpush.msra.mxu0 %v687
        %795 = vmatpush.msra.mxu0 %v686
        %796 = vmatpush.msra.mxu0 %v685
        %797 = vmatpush.msra.mxu0 %v684
        %798 = vmatpush.msra.mxu0 %v683
        %799 = vmatpush.msra.mxu0 %v682
        %800 = vmatpush.msra.mxu0 %v681
        %801 = vmatpush.msra.mxu0 %v680
        %802 = vmatpush.msra.mxu0 %v679
        %803 = vmatpush.msra.mxu0 %v678
        %804 = vmatpush.msra.mxu0 %v677
        %805 = vmatpush.msra.mxu0 %v676
        %806 = vmatpush.msra.mxu0 %v675
        %807 = vmatpush.msra.mxu0 %v674
        %808 = vmatmul.f32.gmra.mxu0 %v612
        %v809 = vpop.f32.mrf.mxu0
        %v810 = vadd.f32 %v769, %v809
        %811 = vmatmul.f32.gmra.mxu0 %v616
        %v812 = vpop.f32.mrf.mxu0
        %v813 = vadd.f32 %v772, %v812
        %814 = vmatmul.f32.gmra.mxu0 %v620
        %v815 = vpop.f32.mrf.mxu0
        %v816 = vadd.f32 %v775, %v815
        %817 = vmatmul.f32.gmra.mxu0 %v624
        %v818 = vpop.f32.mrf.mxu0
        %v819 = vadd.f32 %v778, %v818
        %820 = vmatmul.f32.gmra.mxu0 %v628
        %v821 = vpop.f32.mrf.mxu0
        %v822 = vadd.f32 %v781, %v821
        %823 = vmatmul.f32.gmra.mxu0 %v632
        %v824 = vpop.f32.mrf.mxu0
        %v825 = vadd.f32 %v784, %v824
        %826 = vmatmul.f32.gmra.mxu0 %v636
        %v827 = vpop.f32.mrf.mxu0
        %v828 = vadd.f32 %v787, %v827
        %829 = vmatmul.f32.gmra.mxu0 %v640
        %v830 = vpop.f32.mrf.mxu0
        %v831 = vadd.f32 %v790, %v830
        %832 = vdwg.mxu0
        %833 = vmatpush.msra.mxu0 %v705
        %834 = vmatpush.msra.mxu0 %v704
        %835 = vmatpush.msra.mxu0 %v703
        %836 = vmatpush.msra.mxu0 %v702
        %837 = vmatpush.msra.mxu0 %v701
        %838 = vmatpush.msra.mxu0 %v700
        %839 = vmatpush.msra.mxu0 %v699
        %840 = vmatpush.msra.mxu0 %v698
        %841 = vmatpush.msra.mxu0 %v697
        %842 = vmatpush.msra.mxu0 %v696
        %843 = vmatpush.msra.mxu0 %v695
        %844 = vmatpush.msra.mxu0 %v694
        %845 = vmatpush.msra.mxu0 %v693
        %846 = vmatpush.msra.mxu0 %v692
        %847 = vmatpush.msra.mxu0 %v691
        %848 = vmatpush.msra.mxu0 %v690
        %849 = vmatmul.f32.gmra.mxu0 %v613
        %v850 = vpop.f32.mrf.mxu0
        %v851 = vadd.f32 %v810, %v850
        %852 = vmatmul.f32.gmra.mxu0 %v617
        %v853 = vpop.f32.mrf.mxu0
        %v854 = vadd.f32 %v813, %v853
        %855 = vmatmul.f32.gmra.mxu0 %v621
        %v856 = vpop.f32.mrf.mxu0
        %v857 = vadd.f32 %v816, %v856
        %858 = vmatmul.f32.gmra.mxu0 %v625
        %v859 = vpop.f32.mrf.mxu0
        %v860 = vadd.f32 %v819, %v859
        %861 = vmatmul.f32.gmra.mxu0 %v629
        %v862 = vpop.f32.mrf.mxu0
        %v863 = vadd.f32 %v822, %v862
        %864 = vmatmul.f32.gmra.mxu0 %v633
        %v865 = vpop.f32.mrf.mxu0
        %v866 = vadd.f32 %v825, %v865
        %867 = vmatmul.f32.gmra.mxu0 %v637
        %v868 = vpop.f32.mrf.mxu0
        %v869 = vadd.f32 %v828, %v868
        %870 = vmatmul.f32.gmra.mxu0 %v641
        %v871 = vpop.f32.mrf.mxu0
        %v872 = vadd.f32 %v831, %v871
        %873 = vdwg.mxu0
        %v874 = vadd.f32 %v851, %v364
        %v875 = vadd.f32 %v854, %v365
        %v876 = vadd.f32 %v857, %v366
        %v877 = vadd.f32 %v860, %v367
        %v878 = vadd.f32 %v863, %v368
        %v879 = vadd.f32 %v866, %v369
        %v880 = vadd.f32 %v869, %v370
        %v881 = vadd.f32 %v872, %v371
        %v882 = vld [vmem:[%s5] sm:$0x1]
        %v883 = vld [vmem:[%s6] sm:$0x1]
        %884 = vadd.xlane.f32.xlu0 %v874
        %v885 = vpop.xlane.xlu0 %884
        %886 = vadd.xlane.f32.xlu0 %v875
        %v887 = vpop.xlane.xlu0 %886
        %888 = vadd.xlane.f32.xlu0 %v876
        %v889 = vpop.xlane.xlu0 %888
        %890 = vadd.xlane.f32.xlu0 %v877
        %v891 = vpop.xlane.xlu0 %890
        %892 = vadd.xlane.f32.xlu0 %v878
        %v893 = vpop.xlane.xlu0 %892
        %894 = vadd.xlane.f32.xlu0 %v879
        %v895 = vpop.xlane.xlu0 %894
        %896 = vadd.xlane.f32.xlu0 %v880
        %v897 = vpop.xlane.xlu0 %896
        %898 = vadd.xlane.f32.xlu0 %v881
        %v899 = vpop.xlane.xlu0 %898
        %v900 = vmul.f32 %v874, %v874
        %v901 = vmul.f32 %v875, %v875
        %v902 = vmul.f32 %v876, %v876
        %v903 = vmul.f32 %v877, %v877
        %v904 = vmul.f32 %v878, %v878
        %v905 = vmul.f32 %v879, %v879
        %v906 = vmul.f32 %v880, %v880
        %v907 = vmul.f32 %v881, %v881
        %908 = vadd.xlane.f32.xlu0 %v900
        %v909 = vpop.xlane.xlu0 %908
        %910 = vadd.xlane.f32.xlu0 %v901
        %v911 = vpop.xlane.xlu0 %910
        %912 = vadd.xlane.f32.xlu0 %v902
        %v913 = vpop.xlane.xlu0 %912
        %914 = vadd.xlane.f32.xlu0 %v903
        %v915 = vpop.xlane.xlu0 %914
        %916 = vadd.xlane.f32.xlu0 %v904
        %v917 = vpop.xlane.xlu0 %916
        %918 = vadd.xlane.f32.xlu0 %v905
        %v919 = vpop.xlane.xlu0 %918
        %920 = vadd.xlane.f32.xlu0 %v906
        %v921 = vpop.xlane.xlu0 %920
        %922 = vadd.xlane.f32.xlu0 %v907
        %v923 = vpop.xlane.xlu0 %922
        %v924 = vmul.f32 %v885, 0.0078125
        %v925 = vmul.f32 %v887, 0.0078125
        %v926 = vmul.f32 %v889, 0.0078125
        %v927 = vmul.f32 %v891, 0.0078125
        %v928 = vmul.f32 %v893, 0.0078125
        %v929 = vmul.f32 %v895, 0.0078125
        %v930 = vmul.f32 %v897, 0.0078125
        %v931 = vmul.f32 %v899, 0.0078125
        %v932 = vmul.f32 %v924, %v885
        %v933 = vmul.f32 %v925, %v887
        %v934 = vmul.f32 %v926, %v889
        %v935 = vmul.f32 %v927, %v891
        %v936 = vmul.f32 %v928, %v893
        %v937 = vmul.f32 %v929, %v895
        %v938 = vmul.f32 %v930, %v897
        %v939 = vmul.f32 %v931, %v899
        %v940 = vsub.f32 %v909, %v932
        %v941 = vsub.f32 %v911, %v933
        %v942 = vsub.f32 %v913, %v934
        %v943 = vsub.f32 %v915, %v935
        %v944 = vsub.f32 %v917, %v936
        %v945 = vsub.f32 %v919, %v937
        %v946 = vsub.f32 %v921, %v938
        %v947 = vsub.f32 %v923, %v939
        %v948 = vmax.f32 %v940, 0.0
        %v949 = vmax.f32 %v941, 0.0
        %v950 = vmax.f32 %v942, 0.0
        %v951 = vmax.f32 %v943, 0.0
        %v952 = vmax.f32 %v944, 0.0
        %v953 = vmax.f32 %v945, 0.0
        %v954 = vmax.f32 %v946, 0.0
        %v955 = vmax.f32 %v947, 0.0
        %v956 = vrcp.pop 127.0
        %v957 = vmul.f32 127.0, %v956
        %v958 = vsub.f32 1.0, %v957
        %v959 = vmul.f32 %v956, %v958
        %v960 = vadd.f32 %v956, %v959
        %vm961 = vweird.f32 %v956
        %v962 = vsel %vm961, %v956, %v960
        %v963 = vmul.f32 %v948, %v962
        %v964 = vmul.f32 %v949, %v962
        %v965 = vmul.f32 %v950, %v962
        %v966 = vmul.f32 %v951, %v962
        %v967 = vmul.f32 %v952, %v962
        %v968 = vmul.f32 %v953, %v962
        %v969 = vmul.f32 %v954, %v962
        %v970 = vmul.f32 %v955, %v962
        %v971 = vrsqrt.pop %v963
        %v972 = vmul.f32 %v971, %v963
        %v973 = vmul.f32 %v972, %v971
        %v974 = vmul.f32 0.5, %v973
        %v975 = vsub.f32 1.5, %v974
        %v976 = vmul.f32 %v971, %v975
        %v977 = vmul.f32 %v963, %v976
        %vm978 = vcmp.eq.f32.partialorder %v963, inf
        %v979 = vsel %vm978, %v963, %v977
        %vm980 = vcmp.eq.f32.partialorder %v963, 0.0
        %v981 = vand.u32 %v963, 2147483648
        %v982 = vsel %vm980, %v981, %v979
        %v983 = vrsqrt.pop %v964
        %v984 = vmul.f32 %v983, %v964
        %v985 = vmul.f32 %v984, %v983
        %v986 = vmul.f32 0.5, %v985
        %v987 = vsub.f32 1.5, %v986
        %v988 = vmul.f32 %v983, %v987
        %v989 = vmul.f32 %v964, %v988
        %vm990 = vcmp.eq.f32.partialorder %v964, inf
        %v991 = vsel %vm990, %v964, %v989
        %vm992 = vcmp.eq.f32.partialorder %v964, 0.0
        %v993 = vand.u32 %v964, 2147483648
        %v994 = vsel %vm992, %v993, %v991
        %v995 = vrsqrt.pop %v965
        %v996 = vmul.f32 %v995, %v965
        %v997 = vmul.f32 %v996, %v995
        %v998 = vmul.f32 0.5, %v997
        %v999 = vsub.f32 1.5, %v998
        %v1000 = vmul.f32 %v995, %v999
        %v1001 = vmul.f32 %v965, %v1000
        %vm1002 = vcmp.eq.f32.partialorder %v965, inf
        %v1003 = vsel %vm1002, %v965, %v1001
        %vm1004 = vcmp.eq.f32.partialorder %v965, 0.0
        %v1005 = vand.u32 %v965, 2147483648
        %v1006 = vsel %vm1004, %v1005, %v1003
        %v1007 = vrsqrt.pop %v966
        %v1008 = vmul.f32 %v1007, %v966
        %v1009 = vmul.f32 %v1008, %v1007
        %v1010 = vmul.f32 0.5, %v1009
        %v1011 = vsub.f32 1.5, %v1010
        %v1012 = vmul.f32 %v1007, %v1011
        %v1013 = vmul.f32 %v966, %v1012
        %vm1014 = vcmp.eq.f32.partialorder %v966, inf
        %v1015 = vsel %vm1014, %v966, %v1013
        %vm1016 = vcmp.eq.f32.partialorder %v966, 0.0
        %v1017 = vand.u32 %v966, 2147483648
        %v1018 = vsel %vm1016, %v1017, %v1015
        %v1019 = vrsqrt.pop %v967
        %v1020 = vmul.f32 %v1019, %v967
        %v1021 = vmul.f32 %v1020, %v1019
        %v1022 = vmul.f32 0.5, %v1021
        %v1023 = vsub.f32 1.5, %v1022
        %v1024 = vmul.f32 %v1019, %v1023
        %v1025 = vmul.f32 %v967, %v1024
        %vm1026 = vcmp.eq.f32.partialorder %v967, inf
        %v1027 = vsel %vm1026, %v967, %v1025
        %vm1028 = vcmp.eq.f32.partialorder %v967, 0.0
        %v1029 = vand.u32 %v967, 2147483648
        %v1030 = vsel %vm1028, %v1029, %v1027
        %v1031 = vrsqrt.pop %v968
        %v1032 = vmul.f32 %v1031, %v968
        %v1033 = vmul.f32 %v1032, %v1031
        %v1034 = vmul.f32 0.5, %v1033
        %v1035 = vsub.f32 1.5, %v1034
        %v1036 = vmul.f32 %v1031, %v1035
        %v1037 = vmul.f32 %v968, %v1036
        %vm1038 = vcmp.eq.f32.partialorder %v968, inf
        %v1039 = vsel %vm1038, %v968, %v1037
        %vm1040 = vcmp.eq.f32.partialorder %v968, 0.0
        %v1041 = vand.u32 %v968, 2147483648
        %v1042 = vsel %vm1040, %v1041, %v1039
        %v1043 = vrsqrt.pop %v969
        %v1044 = vmul.f32 %v1043, %v969
        %v1045 = vmul.f32 %v1044, %v1043
        %v1046 = vmul.f32 0.5, %v1045
        %v1047 = vsub.f32 1.5, %v1046
        %v1048 = vmul.f32 %v1043, %v1047
        %v1049 = vmul.f32 %v969, %v1048
        %vm1050 = vcmp.eq.f32.partialorder %v969, inf
        %v1051 = vsel %vm1050, %v969, %v1049
        %vm1052 = vcmp.eq.f32.partialorder %v969, 0.0
        %v1053 = vand.u32 %v969, 2147483648
        %v1054 = vsel %vm1052, %v1053, %v1051
        %v1055 = vrsqrt.pop %v970
        %v1056 = vmul.f32 %v1055, %v970
        %v1057 = vmul.f32 %v1056, %v1055
        %v1058 = vmul.f32 0.5, %v1057
        %v1059 = vsub.f32 1.5, %v1058
        %v1060 = vmul.f32 %v1055, %v1059
        %v1061 = vmul.f32 %v970, %v1060
        %vm1062 = vcmp.eq.f32.partialorder %v970, inf
        %v1063 = vsel %vm1062, %v970, %v1061
        %vm1064 = vcmp.eq.f32.partialorder %v970, 0.0
        %v1065 = vand.u32 %v970, 2147483648
        %v1066 = vsel %vm1064, %v1065, %v1063
        %v1067 = vadd.f32 %v982, 1e-06
        %v1068 = vadd.f32 %v994, 1e-06
        %v1069 = vadd.f32 %v1006, 1e-06
        %v1070 = vadd.f32 %v1018, 1e-06
        %v1071 = vadd.f32 %v1030, 1e-06
        %v1072 = vadd.f32 %v1042, 1e-06
        %v1073 = vadd.f32 %v1054, 1e-06
        %v1074 = vadd.f32 %v1066, 1e-06
        %v1075 = vrcp.pop %v1067
        %v1076 = vmul.f32 %v1067, %v1075
        %v1077 = vsub.f32 1.0, %v1076
        %v1078 = vmul.f32 %v1075, %v1077
        %v1079 = vadd.f32 %v1075, %v1078
        %vm1080 = vweird.f32 %v1067
        %vm1081 = vweird.f32 %v1075
        %vm1082 = vmor %vm1080, %vm1081
        %v1083 = vsel %vm1082, %v1075, %v1079
        %v1084 = vand.u32 2147483647, %v1067
        %vm1085 = vcmp.eq.f32.partialorder %v1084, 8.507059e+37
        %v1086 = vand.u32 %v1067, 2147483648
        %v1087 = vor.u32 1.1754944e-38, %v1086
        %v1088 = vsel %vm1085, %v1087, %v1083
        %v1089 = vmul.f32 1.0, %v1088
        %v1090 = vrcp.pop %v1068
        %v1091 = vmul.f32 %v1068, %v1090
        %v1092 = vsub.f32 1.0, %v1091
        %v1093 = vmul.f32 %v1090, %v1092
        %v1094 = vadd.f32 %v1090, %v1093
        %vm1095 = vweird.f32 %v1068
        %vm1096 = vweird.f32 %v1090
        %vm1097 = vmor %vm1095, %vm1096
        %v1098 = vsel %vm1097, %v1090, %v1094
        %v1099 = vand.u32 2147483647, %v1068
        %vm1100 = vcmp.eq.f32.partialorder %v1099, 8.507059e+37
        %v1101 = vand.u32 %v1068, 2147483648
        %v1102 = vor.u32 1.1754944e-38, %v1101
        %v1103 = vsel %vm1100, %v1102, %v1098
        %v1104 = vmul.f32 1.0, %v1103
        %v1105 = vrcp.pop %v1069
        %v1106 = vmul.f32 %v1069, %v1105
        %v1107 = vsub.f32 1.0, %v1106
        %v1108 = vmul.f32 %v1105, %v1107
        %v1109 = vadd.f32 %v1105, %v1108
        %vm1110 = vweird.f32 %v1069
        %vm1111 = vweird.f32 %v1105
        %vm1112 = vmor %vm1110, %vm1111
        %v1113 = vsel %vm1112, %v1105, %v1109
        %v1114 = vand.u32 2147483647, %v1069
        %vm1115 = vcmp.eq.f32.partialorder %v1114, 8.507059e+37
        %v1116 = vand.u32 %v1069, 2147483648
        %v1117 = vor.u32 1.1754944e-38, %v1116
        %v1118 = vsel %vm1115, %v1117, %v1113
        %v1119 = vmul.f32 1.0, %v1118
        %v1120 = vrcp.pop %v1070
        %v1121 = vmul.f32 %v1070, %v1120
        %v1122 = vsub.f32 1.0, %v1121
        %v1123 = vmul.f32 %v1120, %v1122
        %v1124 = vadd.f32 %v1120, %v1123
        %vm1125 = vweird.f32 %v1070
        %vm1126 = vweird.f32 %v1120
        %vm1127 = vmor %vm1125, %vm1126
        %v1128 = vsel %vm1127, %v1120, %v1124
        %v1129 = vand.u32 2147483647, %v1070
        %vm1130 = vcmp.eq.f32.partialorder %v1129, 8.507059e+37
        %v1131 = vand.u32 %v1070, 2147483648
        %v1132 = vor.u32 1.1754944e-38, %v1131
        %v1133 = vsel %vm1130, %v1132, %v1128
        %v1134 = vmul.f32 1.0, %v1133
        %v1135 = vrcp.pop %v1071
        %v1136 = vmul.f32 %v1071, %v1135
        %v1137 = vsub.f32 1.0, %v1136
        %v1138 = vmul.f32 %v1135, %v1137
        %v1139 = vadd.f32 %v1135, %v1138
        %vm1140 = vweird.f32 %v1071
        %vm1141 = vweird.f32 %v1135
        %vm1142 = vmor %vm1140, %vm1141
        %v1143 = vsel %vm1142, %v1135, %v1139
        %v1144 = vand.u32 2147483647, %v1071
        %vm1145 = vcmp.eq.f32.partialorder %v1144, 8.507059e+37
        %v1146 = vand.u32 %v1071, 2147483648
        %v1147 = vor.u32 1.1754944e-38, %v1146
        %v1148 = vsel %vm1145, %v1147, %v1143
        %v1149 = vmul.f32 1.0, %v1148
        %v1150 = vrcp.pop %v1072
        %v1151 = vmul.f32 %v1072, %v1150
        %v1152 = vsub.f32 1.0, %v1151
        %v1153 = vmul.f32 %v1150, %v1152
        %v1154 = vadd.f32 %v1150, %v1153
        %vm1155 = vweird.f32 %v1072
        %vm1156 = vweird.f32 %v1150
        %vm1157 = vmor %vm1155, %vm1156
        %v1158 = vsel %vm1157, %v1150, %v1154
        %v1159 = vand.u32 2147483647, %v1072
        %vm1160 = vcmp.eq.f32.partialorder %v1159, 8.507059e+37
        %v1161 = vand.u32 %v1072, 2147483648
        %v1162 = vor.u32 1.1754944e-38, %v1161
        %v1163 = vsel %vm1160, %v1162, %v1158
        %v1164 = vmul.f32 1.0, %v1163
        %v1165 = vrcp.pop %v1073
        %v1166 = vmul.f32 %v1073, %v1165
        %v1167 = vsub.f32 1.0, %v1166
        %v1168 = vmul.f32 %v1165, %v1167
        %v1169 = vadd.f32 %v1165, %v1168
        %vm1170 = vweird.f32 %v1073
        %vm1171 = vweird.f32 %v1165
        %vm1172 = vmor %vm1170, %vm1171
        %v1173 = vsel %vm1172, %v1165, %v1169
        %v1174 = vand.u32 2147483647, %v1073
        %vm1175 = vcmp.eq.f32.partialorder %v1174, 8.507059e+37
        %v1176 = vand.u32 %v1073, 2147483648
        %v1177 = vor.u32 1.1754944e-38, %v1176
        %v1178 = vsel %vm1175, %v1177, %v1173
        %v1179 = vmul.f32 1.0, %v1178
        %v1180 = vrcp.pop %v1074
        %v1181 = vmul.f32 %v1074, %v1180
        %v1182 = vsub.f32 1.0, %v1181
        %v1183 = vmul.f32 %v1180, %v1182
        %v1184 = vadd.f32 %v1180, %v1183
        %vm1185 = vweird.f32 %v1074
        %vm1186 = vweird.f32 %v1180
        %vm1187 = vmor %vm1185, %vm1186
        %v1188 = vsel %vm1187, %v1180, %v1184
        %v1189 = vand.u32 2147483647, %v1074
        %vm1190 = vcmp.eq.f32.partialorder %v1189, 8.507059e+37
        %v1191 = vand.u32 %v1074, 2147483648
        %v1192 = vor.u32 1.1754944e-38, %v1191
        %v1193 = vsel %vm1190, %v1192, %v1188
        %v1194 = vmul.f32 1.0, %v1193
        %v1195 = vsub.f32 %v874, %v924
        %v1196 = vsub.f32 %v875, %v925
        %v1197 = vsub.f32 %v876, %v926
        %v1198 = vsub.f32 %v877, %v927
        %v1199 = vsub.f32 %v878, %v928
        %v1200 = vsub.f32 %v879, %v929
        %v1201 = vsub.f32 %v880, %v930
        %v1202 = vsub.f32 %v881, %v931
        %v1203 = vmul.f32 %v1195, %v1089
        %v1204 = vmul.f32 %v1196, %v1104
        %v1205 = vmul.f32 %v1197, %v1119
        %v1206 = vmul.f32 %v1198, %v1134
        %v1207 = vmul.f32 %v1199, %v1149
        %v1208 = vmul.f32 %v1200, %v1164
        %v1209 = vmul.f32 %v1201, %v1179
        %v1210 = vmul.f32 %v1202, %v1194
        %v1212 = vperm.slane %v882, 0
        %v1214 = vmul.f32 %v1212, %v1203
        %v1215 = vmul.f32 %v1212, %v1204
        %v1216 = vmul.f32 %v1212, %v1205
        %v1217 = vmul.f32 %v1212, %v1206
        %v1218 = vmul.f32 %v1212, %v1207
        %v1219 = vmul.f32 %v1212, %v1208
        %v1220 = vmul.f32 %v1212, %v1209
        %v1221 = vmul.f32 %v1212, %v1210
        %v1223 = vperm.slane %v883, 0
        %v1225 = vadd.f32 %v1214, %v1223
        %v1226 = vadd.f32 %v1215, %v1223
        %v1227 = vadd.f32 %v1216, %v1223
        %v1228 = vadd.f32 %v1217, %v1223
        %v1229 = vadd.f32 %v1218, %v1223
        %v1230 = vadd.f32 %v1219, %v1223
        %v1231 = vadd.f32 %v1220, %v1223
        %v1232 = vadd.f32 %v1221, %v1223
        %1233 = vst [vmem:[%s353] sm:$0xff] %v1225
        %1234 = vst [vmem:[%s353 + $0x8] sm:$0xff] %v1226
        %1235 = vst [vmem:[%s353 + $0x10] sm:$0xff] %v1227
        %1236 = vst [vmem:[%s353 + $0x18] sm:$0xff] %v1228
        %1237 = vst [vmem:[%s353 + $0x20] sm:$0xff] %v1229
        %1238 = vst [vmem:[%s353 + $0x28] sm:$0xff] %v1230
        %1239 = vst [vmem:[%s353 + $0x30] sm:$0xff] %v1231
        %1240 = vst [vmem:[%s353 + $0x38] sm:$0xff] %v1232
        %s1241 = sand.u32 %s186, 1
        %s1242 = scalar_lea.sflag [#allocation4], %s1241
        %s1243 = sand.u32 %s186, 1
        %s1244 = smul.addr %s1243, 64
        %s1245 = scalar_lea.vmem [#allocation10], %s1244
        // Predicated region
        $region65: #{tpu_custom_call.1} parent=47 // pred_check
          %p1246 = pneg %p196
        $region66: #{tpu_custom_call.1} parent=47 // pred_check_branch
          %1248 = sbr.rel (%p1246) target = $region68
        $region67: #{tpu_custom_call.1} parent=47 // pred_region
          %s1249 = smul.u32 8, %s26
          %s1250 = ssub.s32 18, %s1249
          %p1251 = scmp.lt.s32.totalorder %s1250, 8
          %s1252 = scalar_select %p1251, %s1250, 8
          %s1253 = smul.u32 8, %s1252
          %s1254 = ssub.s32 64, %s1253
          %s1255 = sshll.u32 %s1254, 4
          %1256 = vsyncadd %s1242, %s1255
          %p1257 = scmp.ne.s32.totalorder 0, %s1253
          %s1258 = smul.addr %s1249, 8
          %s1259 = scalar_lea.hbm %s7, %s1258
          %s1260 = smul.u32 8, %s1252
          %s1261 = sshll.u32 %s1245, 4
          %s1262 = int_to_ptr.vmem [resolvable:$true] %s1261
          %s1263 = sshll.u32 %s1259, 4
          %s1264 = int_to_ptr.hbm [resolvable:$true] %s1263
          %s1265 = sshll.u32 %s1260, 4
          %1269 = dma.vmem_to_hbm [thread:$0]  (%p1257), %s1262, %s1265, %s1264, %s1242, 128, 128, 8
        $region68: #{tpu_custom_call.1} parent=47 // pred_fallthru
          _
      $region48: #{tpu_custom_call.1} parent=5 // pred_fallthru
        _
      %p1270 = scmp.le.s32.totalorder 2, %s21
      // Predicated region
      $region69: #{tpu_custom_call.1} parent=5 // pred_check
        %p1271 = pneg %p1270
      $region70: #{tpu_custom_call.1} parent=5 // pred_check_branch
        %1273 = sbr.rel (%p1271) target = $region72
      $region71: #{tpu_custom_call.1} parent=5 // pred_region
        %s1274 = ssub.s32 %s21, 2
        // Predicated region
        $region73: #{tpu_custom_call.1} parent=71 // pred_check
          %p1275 = pneg %p202
        $region74: #{tpu_custom_call.1} parent=71 // pred_check_branch
          %1277 = sbr.rel (%p1275) target = $region76
        $region75: #{tpu_custom_call.1} parent=71 // pred_region
          %s1278 = sand.u32 %s187, 1
          %s1279 = scalar_lea.sflag [#allocation4], %s1278
          %s1280 = sand.u32 %s187, 1
          %s1281 = smul.addr %s1280, 64
          %s1282 = scalar_lea.vmem [#allocation10], %s1281
          %1284 = dma.done %s1279, 1024
        $region76: #{tpu_custom_call.1} parent=71 // pred_fallthru
          _
      $region72: #{tpu_custom_call.1} parent=5 // pred_fallthru
        _
    $region6: #{tpu_custom_call.1} parent=1 // loop_footer
      %s25 = sadd.s32 1, %s21
    $region7: #{tpu_custom_call.1} parent=1 // loop_footer_branch
      %20 = sbr.rel target = $region3
    $region8: #{tpu_custom_call.1} parent=1 // loop_exit
      _
    %1285 = vsyncpa [#allocation3], 1
    %s1286 = scalar_lea.sflag [#allocation3], 1
    %1287 = vsyncpa %s1286, 1
    %1288 = vsyncpa [#allocation6], 1
    %1289 = vsyncpa [#allocation9], 1
    %1290 = vsyncpa [#allocation4], 1
    %s1291 = scalar_lea.sflag [#allocation4], 1
    %1292 = vsyncpa %s1291, 1

</llo_original>
